<compile_context>
chip_gen: v7x
topology: tpu7x:2x2x1
jax: 0.10.0
libtpu: 0.0.40
codegen_flags: <defaults>
</compile_context>

<pallas_src>
import numpy as np

import jax
import jax.numpy as jnp
from jax.experimental import pallas as pl
from jax.experimental.pallas import tpu as pltpu


# ---------------------------------------------------------------------------
# Fused Pallas kernel: conv1 -> pool1 -> conv2 -> pool2 -> linear head
# Activations are 2-D, lane-dense: rows = H, lanes = W * C (w-major, c-minor),
# which is exactly NHWC flattening, so the final "flatten" is free.
# ---------------------------------------------------------------------------
def _bodyhead_kernel(x_ref, r1_ref, wb1_ref, b1_ref, sw1_ref, rh1_ref,
                     r2_ref, wb2_ref, b2_ref, sw2_ref, rh2_ref,
                     wh_ref, bh_ref, o_ref):
    f32 = jnp.float32
    x = x_ref[0]                                        # (H, W*Cin)

    # ---- conv1 (3x3, pad=1) + bias + ReLU:  y1: (H, W*C1) -----------------
    # vertical tap dh: row-shift (with zero boundary) via tiny selection
    # matmul; horizontal taps + channel mixing folded into the band weight.
    acc1 = jnp.zeros((x.shape[0], wb1_ref.shape[-1]), f32)
    for dh in range(3):
        shifted = jnp.dot(r1_ref[dh], x, preferred_element_type=f32)
        acc1 = acc1 + jnp.dot(shifted, wb1_ref[dh], preferred_element_type=f32)
    y1 = jnp.maximum(acc1 + b1_ref[...], 0.0)

    # ---- maxpool 2x2 -> p1: (H/2, (W/2)*C1) -------------------------------
    # even/odd W columns picked by 0/1 lane-selection matmuls (exact), then
    # even/odd rows picked by tiny row-selection matmuls; elementwise max.
    wm = jnp.maximum(jnp.dot(y1, sw1_ref[0], preferred_element_type=f32),
                     jnp.dot(y1, sw1_ref[1], preferred_element_type=f32))
    p1 = jnp.maximum(jnp.dot(rh1_ref[0], wm, preferred_element_type=f32),
                     jnp.dot(rh1_ref[1], wm, preferred_element_type=f32))

    # ---- conv2 (3x3, pad=1) + bias + ReLU:  y2: (H/2, (W/2)*C1) -----------
    acc2 = jnp.zeros((p1.shape[0], wb2_ref.shape[-1]), f32)
    for dh in range(3):
        shifted = jnp.dot(r2_ref[dh], p1, preferred_element_type=f32)
        acc2 = acc2 + jnp.dot(shifted, wb2_ref[dh], preferred_element_type=f32)
    y2 = jnp.maximum(acc2 + b2_ref[...], 0.0)

    # ---- maxpool 2x2 -> p2: (H/4, (W/4)*C1) -------------------------------
    wm2 = jnp.maximum(jnp.dot(y2, sw2_ref[0], preferred_element_type=f32),
                      jnp.dot(y2, sw2_ref[1], preferred_element_type=f32))
    p2 = jnp.maximum(jnp.dot(rh2_ref[0], wm2, preferred_element_type=f32),
                     jnp.dot(rh2_ref[1], wm2, preferred_element_type=f32))

    # ---- head: Linear over the NHWC-flattened feature ---------------------
    # Row h of p2 is the contiguous chunk feat[h*W4*C1 : (h+1)*W4*C1], so the
    # head is a sum of small per-row matmuls against the pre-sliced,
    # pre-transposed, class-padded head weight. Output is 128-lane dense.
    out = bh_ref[...]                                   # (1, 128)
    for h in range(p2.shape[0]):
        out = out + jnp.dot(p2[h:h + 1, :], wh_ref[h],
                            preferred_element_type=f32)
    o_ref[0] = out


# ---------------------------------------------------------------------------
# One-time (init) preprocessing of the weights into band / selection operators
# ---------------------------------------------------------------------------
def prepare_operators(params, *, H, W, ncpad=128):
    w1 = np.asarray(params["w1"], np.float32)   # (3,3,Cin,C1)  HWIO
    b1 = np.asarray(params["b1"], np.float32)
    w2 = np.asarray(params["w2"], np.float32)   # (3,3,C1,C1)   HWIO
    b2 = np.asarray(params["b2"], np.float32)
    wh = np.asarray(params["wh"], np.float32)   # (nc, H4*W4*C1) NHWC flatten
    bh = np.asarray(params["bh"], np.float32)
    C1 = w1.shape[3]
    nc = wh.shape[0]
    H2, W2, H4, W4 = H // 2, W // 2, H // 4, W // 4

    def row_shift(n):                           # (3, n, n): out[h] = in[h+dh-1]
        r = np.zeros((3, n, n), np.float32)
        for dh in range(3):
            for h in range(n):
                s = h + dh - 1
                if 0 <= s < n:
                    r[dh, h, s] = 1.0
        return r

    def band_weights(w, width):                 # (3, width*ci, width*co)
        ci, co = w.shape[2], w.shape[3]
        wb = np.zeros((3, width * ci, width * co), np.float32)
        for dh in range(3):
            for wo in range(width):
                for dw in range(3):
                    ws = wo + dw - 1
                    if 0 <= ws < width:
                        wb[dh, ws * ci:(ws + 1) * ci,
                           wo * co:(wo + 1) * co] = w[dh, dw]
        return wb

    def pool_lane_sel(width, c):                # (2, width*c, (width//2)*c)
        s = np.zeros((2, width * c, (width // 2) * c), np.float32)
        for par in range(2):
            for wo in range(width // 2):
                for ch in range(c):
                    s[par, (2 * wo + par) * c + ch, wo * c + ch] = 1.0
        return s

    def pool_row_sel(h):                        # (2, h//2, h)
        s = np.zeros((2, h // 2, h), np.float32)
        for par in range(2):
            for ho in range(h // 2):
                s[par, ho, 2 * ho + par] = 1.0
        return s

    wh_pad = np.zeros((H4, W4 * C1, ncpad), np.float32)
    wh_pad[:, :, :nc] = wh.T.reshape(H4, W4 * C1, nc)
    bh_pad = np.zeros((1, ncpad), np.float32)
    bh_pad[0, :nc] = bh

    ops = dict(
        r1=row_shift(H), wb1=band_weights(w1, W), b1=np.tile(b1, W)[None, :],
        sw1=pool_lane_sel(W, C1), rh1=pool_row_sel(H),
        r2=row_shift(H2), wb2=band_weights(w2, W2), b2=np.tile(b2, W2)[None, :],
        sw2=pool_lane_sel(W2, C1), rh2=pool_row_sel(H2),
        wh=wh_pad, bh=bh_pad,
    )
    return {k: jnp.asarray(v) for k, v in ops.items()}, nc


_OP_ORDER = ("r1", "wb1", "b1", "sw1", "rh1",
             "r2", "wb2", "b2", "sw2", "rh2", "wh", "bh")


def _const_spec(a):
    nd = a.ndim
    return pl.BlockSpec(a.shape, lambda n, _nd=nd: (0,) * _nd)


# ---------------------------------------------------------------------------
# Forward: one fused pallas_call, grid over the batch (parallel on v7x)
# ---------------------------------------------------------------------------
def body_head_forward(x_nchw, ops, num_classes, *, ncpad=128):
    N, Cin, H, W = x_nchw.shape
    # NCHW -> NHWC -> lane-dense (N, H, W*Cin); pure metadata/cheap XLA ops.
    x2d = jnp.transpose(x_nchw, (0, 2, 3, 1)).astype(jnp.float32)
    x2d = x2d.reshape(N, H, W * Cin)

    in_specs = [pl.BlockSpec((1, H, W * Cin), lambda n: (n, 0, 0))]
    operands = [x2d]
    for name in _OP_ORDER:
        a = ops[name]
        in_specs.append(_const_spec(a))
        operands.append(a)

    out = pl.pallas_call(
        _bodyhead_kernel,
        out_shape=jax.ShapeDtypeStruct((N, 1, ncpad), jnp.float32),
        grid=(N,),
        in_specs=in_specs,
        out_specs=pl.BlockSpec((1, 1, ncpad), lambda n: (n, 0, 0)),
        compiler_params=pltpu.CompilerParams(
            dimension_semantics=("parallel",)),
    )(*operands)
    return out[:, 0, :num_classes]


def get_context(params):
    """Mirror of BodyHead.get_context(): the head weight."""
    return params["wh"]


# ---------------------------------------------------------------------------
# Pure-JAX reference (correctness check only)
# ---------------------------------------------------------------------------
def ref_forward(x_nchw, params):
    x = jnp.transpose(x_nchw, (0, 2, 3, 1)).astype(jnp.float32)
    for w, b in [(params["w1"], params["b1"]), (params["w2"], params["b2"])]:
        y = jax.lax.conv_general_dilated(
            x, w, window_strides=(1, 1), padding="SAME",
            dimension_numbers=("NHWC", "HWIO", "NHWC"))
        y = jnp.maximum(y + b, 0.0)
        y = jax.lax.reduce_window(
            y, -jnp.inf, jax.lax.max, (1, 2, 2, 1), (1, 2, 2, 1), "VALID")
        x = y
    feat = x.reshape(x.shape[0], -1)
    return feat @ params["wh"].T + params["bh"]


# ---------------------------------------------------------------------------
# Main
# ---------------------------------------------------------------------------
if __name__ == "__main__":
    key = jax.random.PRNGKey(0)
    k_x, k_w1, k_b1, k_w2, k_b2, k_wh, k_bh = jax.random.split(key, 7)

    N, Cin, H, W = 2, 4, 16, 16
    Chid = 8
    num_classes = 5
    feat_dim = Chid * (H // 4) * (W // 4)   # 8 * 4 * 4 = 128

    x = jax.random.normal(k_x, (N, Cin, H, W), dtype=jnp.float32)

    params = {
        "w1": 0.1 * jax.random.normal(k_w1, (3, 3, Cin, Chid), jnp.float32),   # HWIO
        "b1": 0.1 * jax.random.normal(k_b1, (Chid,), jnp.float32),
        "w2": 0.1 * jax.random.normal(k_w2, (3, 3, Chid, Chid), jnp.float32),  # HWIO
        "b2": 0.1 * jax.random.normal(k_b2, (Chid,), jnp.float32),
        "wh": 0.1 * jax.random.normal(k_wh, (num_classes, feat_dim), jnp.float32),
        "bh": 0.1 * jax.random.normal(k_bh, (num_classes,), jnp.float32),
    }

    ops, nc = prepare_operators(params, H=H, W=W)

    out = jax.block_until_ready(body_head_forward(x, ops, nc))
    ref = jax.block_until_ready(ref_forward(x, params))

    assert out.shape == (N, num_classes), out.shape
    assert jnp.allclose(out, ref, atol=1e-3, rtol=1e-3), float(
        jnp.max(jnp.abs(out - ref)))

    print("KERNEL_OK")
</pallas_src>

<mosaic_0001>
module attributes {stable_mosaic.version = 11 : i64} {
  func.func @_bodyhead_kernel(%arg0: i32, %arg1: memref<1x16x64xf32, #tpu.memory_space<vmem>>, %arg2: memref<3x16x16xf32, #tpu.memory_space<vmem>>, %arg3: memref<3x64x128xf32, #tpu.memory_space<vmem>>, %arg4: memref<1x128xf32, #tpu.memory_space<vmem>>, %arg5: memref<2x128x64xf32, #tpu.memory_space<vmem>>, %arg6: memref<2x8x16xf32, #tpu.memory_space<vmem>>, %arg7: memref<3x8x8xf32, #tpu.memory_space<vmem>>, %arg8: memref<3x64x64xf32, #tpu.memory_space<vmem>>, %arg9: memref<1x64xf32, #tpu.memory_space<vmem>>, %arg10: memref<2x64x32xf32, #tpu.memory_space<vmem>>, %arg11: memref<2x4x8xf32, #tpu.memory_space<vmem>>, %arg12: memref<4x32x128xf32, #tpu.memory_space<vmem>>, %arg13: memref<1x128xf32, #tpu.memory_space<vmem>>, %arg14: memref<1x1x128xf32, #tpu.memory_space<vmem>>) attributes {dimension_semantics = [#tpu.dimension_semantics<parallel>], iteration_bounds = array<i64: 2>, scalar_prefetch = 0 : i64, scratch_operands = 0 : i64, tpu.core_type = #tpu.core_type<tc>, window_params = [{transform_indices = @transform_0, window_bounds = array<i64: 1, 16, 64>}, {pipeline_mode = #tpu.pipeline_mode<synchronous>, transform_indices = @transform_1, window_bounds = array<i64: 3, 16, 16>}, {pipeline_mode = #tpu.pipeline_mode<synchronous>, transform_indices = @transform_2, window_bounds = array<i64: 3, 64, 128>}, {pipeline_mode = #tpu.pipeline_mode<synchronous>, transform_indices = @transform_3, window_bounds = array<i64: 1, 128>}, {pipeline_mode = #tpu.pipeline_mode<synchronous>, transform_indices = @transform_4, window_bounds = array<i64: 2, 128, 64>}, {pipeline_mode = #tpu.pipeline_mode<synchronous>, transform_indices = @transform_5, window_bounds = array<i64: 2, 8, 16>}, {pipeline_mode = #tpu.pipeline_mode<synchronous>, transform_indices = @transform_6, window_bounds = array<i64: 3, 8, 8>}, {pipeline_mode = #tpu.pipeline_mode<synchronous>, transform_indices = @transform_7, window_bounds = array<i64: 3, 64, 64>}, {pipeline_mode = #tpu.pipeline_mode<synchronous>, transform_indices = @transform_8, window_bounds = array<i64: 1, 64>}, {pipeline_mode = #tpu.pipeline_mode<synchronous>, transform_indices = @transform_9, window_bounds = array<i64: 2, 64, 32>}, {pipeline_mode = #tpu.pipeline_mode<synchronous>, transform_indices = @transform_10, window_bounds = array<i64: 2, 4, 8>}, {pipeline_mode = #tpu.pipeline_mode<synchronous>, transform_indices = @transform_11, window_bounds = array<i64: 4, 32, 128>}, {pipeline_mode = #tpu.pipeline_mode<synchronous>, transform_indices = @transform_12, window_bounds = array<i64: 1, 128>}, {transform_indices = @transform_13, window_bounds = array<i64: 1, 1, 128>}]} {
    %c0 = arith.constant 0 : index
    %c0_0 = arith.constant 0 : index
    %c0_1 = arith.constant 0 : index
    %0 = vector.load %arg1[%c0, %c0_0, %c0_1] : memref<1x16x64xf32, #tpu.memory_space<vmem>>, vector<1x16x64xf32>
    %1 = vector.shape_cast %0 : vector<1x16x64xf32> to vector<16x64xf32>
    %cst = arith.constant 0.000000e+00 : f32
    %2 = vector.broadcast %cst : f32 to vector<16x128xf32>
    %c0_2 = arith.constant 0 : index
    %c0_3 = arith.constant 0 : index
    %c0_4 = arith.constant 0 : index
    %3 = vector.load %arg2[%c0_2, %c0_3, %c0_4] : memref<3x16x16xf32, #tpu.memory_space<vmem>>, vector<1x16x16xf32>
    %4 = vector.shape_cast %3 : vector<1x16x16xf32> to vector<16x16xf32>
    %cst_5 = arith.constant dense<0.000000e+00> : vector<16x64xf32>
    %5 = tpu.matmul %4, %1, %cst_5 {dimension_numbers = #tpu.dot_dimension_numbers<[1], [0], [0], [1], [0, 0, 1, 1], [], []>} : vector<16x16xf32>, vector<16x64xf32>, vector<16x64xf32> -> vector<16x64xf32>
    %c0_6 = arith.constant 0 : index
    %c0_7 = arith.constant 0 : index
    %c0_8 = arith.constant 0 : index
    %6 = vector.load %arg3[%c0_6, %c0_7, %c0_8] : memref<3x64x128xf32, #tpu.memory_space<vmem>>, vector<1x64x128xf32>
    %7 = vector.shape_cast %6 : vector<1x64x128xf32> to vector<64x128xf32>
    %cst_9 = arith.constant dense<0.000000e+00> : vector<16x128xf32>
    %8 = tpu.matmul %5, %7, %cst_9 {dimension_numbers = #tpu.dot_dimension_numbers<[1], [0], [0], [1], [0, 0, 1, 1], [], []>} : vector<16x64xf32>, vector<64x128xf32>, vector<16x128xf32> -> vector<16x128xf32>
    %9 = arith.addf %2, %8 : vector<16x128xf32>
    %c1 = arith.constant 1 : index
    %c0_10 = arith.constant 0 : index
    %c0_11 = arith.constant 0 : index
    %10 = vector.load %arg2[%c1, %c0_10, %c0_11] : memref<3x16x16xf32, #tpu.memory_space<vmem>>, vector<1x16x16xf32>
    %11 = vector.shape_cast %10 : vector<1x16x16xf32> to vector<16x16xf32>
    %cst_12 = arith.constant dense<0.000000e+00> : vector<16x64xf32>
    %12 = tpu.matmul %11, %1, %cst_12 {dimension_numbers = #tpu.dot_dimension_numbers<[1], [0], [0], [1], [0, 0, 1, 1], [], []>} : vector<16x16xf32>, vector<16x64xf32>, vector<16x64xf32> -> vector<16x64xf32>
    %c1_13 = arith.constant 1 : index
    %c0_14 = arith.constant 0 : index
    %c0_15 = arith.constant 0 : index
    %13 = vector.load %arg3[%c1_13, %c0_14, %c0_15] : memref<3x64x128xf32, #tpu.memory_space<vmem>>, vector<1x64x128xf32>
    %14 = vector.shape_cast %13 : vector<1x64x128xf32> to vector<64x128xf32>
    %cst_16 = arith.constant dense<0.000000e+00> : vector<16x128xf32>
    %15 = tpu.matmul %12, %14, %cst_16 {dimension_numbers = #tpu.dot_dimension_numbers<[1], [0], [0], [1], [0, 0, 1, 1], [], []>} : vector<16x64xf32>, vector<64x128xf32>, vector<16x128xf32> -> vector<16x128xf32>
    %16 = arith.addf %9, %15 : vector<16x128xf32>
    %c2 = arith.constant 2 : index
    %c0_17 = arith.constant 0 : index
    %c0_18 = arith.constant 0 : index
    %17 = vector.load %arg2[%c2, %c0_17, %c0_18] : memref<3x16x16xf32, #tpu.memory_space<vmem>>, vector<1x16x16xf32>
    %18 = vector.shape_cast %17 : vector<1x16x16xf32> to vector<16x16xf32>
    %cst_19 = arith.constant dense<0.000000e+00> : vector<16x64xf32>
    %19 = tpu.matmul %18, %1, %cst_19 {dimension_numbers = #tpu.dot_dimension_numbers<[1], [0], [0], [1], [0, 0, 1, 1], [], []>} : vector<16x16xf32>, vector<16x64xf32>, vector<16x64xf32> -> vector<16x64xf32>
    %c2_20 = arith.constant 2 : index
    %c0_21 = arith.constant 0 : index
    %c0_22 = arith.constant 0 : index
    %20 = vector.load %arg3[%c2_20, %c0_21, %c0_22] : memref<3x64x128xf32, #tpu.memory_space<vmem>>, vector<1x64x128xf32>
    %21 = vector.shape_cast %20 : vector<1x64x128xf32> to vector<64x128xf32>
    %cst_23 = arith.constant dense<0.000000e+00> : vector<16x128xf32>
    %22 = tpu.matmul %19, %21, %cst_23 {dimension_numbers = #tpu.dot_dimension_numbers<[1], [0], [0], [1], [0, 0, 1, 1], [], []>} : vector<16x64xf32>, vector<64x128xf32>, vector<16x128xf32> -> vector<16x128xf32>
    %23 = arith.addf %16, %22 : vector<16x128xf32>
    %c0_24 = arith.constant 0 : index
    %c0_25 = arith.constant 0 : index
    %24 = vector.load %arg4[%c0_24, %c0_25] : memref<1x128xf32, #tpu.memory_space<vmem>>, vector<1x128xf32>
    %25 = vector.broadcast %24 : vector<1x128xf32> to vector<16x128xf32>
    %26 = arith.addf %23, %25 : vector<16x128xf32>
    %cst_26 = arith.constant 0.000000e+00 : f32
    %27 = vector.broadcast %cst_26 : f32 to vector<16x128xf32>
    %28 = arith.maximumf %26, %27 : vector<16x128xf32>
    %c0_27 = arith.constant 0 : index
    %c0_28 = arith.constant 0 : index
    %c0_29 = arith.constant 0 : index
    %29 = vector.load %arg5[%c0_27, %c0_28, %c0_29] : memref<2x128x64xf32, #tpu.memory_space<vmem>>, vector<1x128x64xf32>
    %30 = vector.shape_cast %29 : vector<1x128x64xf32> to vector<128x64xf32>
    %cst_30 = arith.constant dense<0.000000e+00> : vector<16x64xf32>
    %31 = tpu.matmul %28, %30, %cst_30 {dimension_numbers = #tpu.dot_dimension_numbers<[1], [0], [0], [1], [0, 0, 1, 1], [], []>} : vector<16x128xf32>, vector<128x64xf32>, vector<16x64xf32> -> vector<16x64xf32>
    %c1_31 = arith.constant 1 : index
    %c0_32 = arith.constant 0 : index
    %c0_33 = arith.constant 0 : index
    %32 = vector.load %arg5[%c1_31, %c0_32, %c0_33] : memref<2x128x64xf32, #tpu.memory_space<vmem>>, vector<1x128x64xf32>
    %33 = vector.shape_cast %32 : vector<1x128x64xf32> to vector<128x64xf32>
    %cst_34 = arith.constant dense<0.000000e+00> : vector<16x64xf32>
    %34 = tpu.matmul %28, %33, %cst_34 {dimension_numbers = #tpu.dot_dimension_numbers<[1], [0], [0], [1], [0, 0, 1, 1], [], []>} : vector<16x128xf32>, vector<128x64xf32>, vector<16x64xf32> -> vector<16x64xf32>
    %35 = arith.maximumf %31, %34 : vector<16x64xf32>
    %c0_35 = arith.constant 0 : index
    %c0_36 = arith.constant 0 : index
    %c0_37 = arith.constant 0 : index
    %36 = vector.load %arg6[%c0_35, %c0_36, %c0_37] : memref<2x8x16xf32, #tpu.memory_space<vmem>>, vector<1x8x16xf32>
    %37 = vector.shape_cast %36 : vector<1x8x16xf32> to vector<8x16xf32>
    %cst_38 = arith.constant dense<0.000000e+00> : vector<8x64xf32>
    %38 = tpu.matmul %37, %35, %cst_38 {dimension_numbers = #tpu.dot_dimension_numbers<[1], [0], [0], [1], [0, 0, 1, 1], [], []>} : vector<8x16xf32>, vector<16x64xf32>, vector<8x64xf32> -> vector<8x64xf32>
    %c1_39 = arith.constant 1 : index
    %c0_40 = arith.constant 0 : index
    %c0_41 = arith.constant 0 : index
    %39 = vector.load %arg6[%c1_39, %c0_40, %c0_41] : memref<2x8x16xf32, #tpu.memory_space<vmem>>, vector<1x8x16xf32>
    %40 = vector.shape_cast %39 : vector<1x8x16xf32> to vector<8x16xf32>
    %cst_42 = arith.constant dense<0.000000e+00> : vector<8x64xf32>
    %41 = tpu.matmul %40, %35, %cst_42 {dimension_numbers = #tpu.dot_dimension_numbers<[1], [0], [0], [1], [0, 0, 1, 1], [], []>} : vector<8x16xf32>, vector<16x64xf32>, vector<8x64xf32> -> vector<8x64xf32>
    %42 = arith.maximumf %38, %41 : vector<8x64xf32>
    %cst_43 = arith.constant 0.000000e+00 : f32
    %43 = vector.broadcast %cst_43 : f32 to vector<8x64xf32>
    %c0_44 = arith.constant 0 : index
    %c0_45 = arith.constant 0 : index
    %c0_46 = arith.constant 0 : index
    %44 = vector.load %arg7[%c0_44, %c0_45, %c0_46] : memref<3x8x8xf32, #tpu.memory_space<vmem>>, vector<1x8x8xf32>
    %45 = vector.shape_cast %44 : vector<1x8x8xf32> to vector<8x8xf32>
    %cst_47 = arith.constant dense<0.000000e+00> : vector<8x64xf32>
    %46 = tpu.matmul %45, %42, %cst_47 {dimension_numbers = #tpu.dot_dimension_numbers<[1], [0], [0], [1], [0, 0, 1, 1], [], []>} : vector<8x8xf32>, vector<8x64xf32>, vector<8x64xf32> -> vector<8x64xf32>
    %c0_48 = arith.constant 0 : index
    %c0_49 = arith.constant 0 : index
    %c0_50 = arith.constant 0 : index
    %47 = vector.load %arg8[%c0_48, %c0_49, %c0_50] : memref<3x64x64xf32, #tpu.memory_space<vmem>>, vector<1x64x64xf32>
    %48 = vector.shape_cast %47 : vector<1x64x64xf32> to vector<64x64xf32>
    %cst_51 = arith.constant dense<0.000000e+00> : vector<8x64xf32>
    %49 = tpu.matmul %46, %48, %cst_51 {dimension_numbers = #tpu.dot_dimension_numbers<[1], [0], [0], [1], [0, 0, 1, 1], [], []>} : vector<8x64xf32>, vector<64x64xf32>, vector<8x64xf32> -> vector<8x64xf32>
    %50 = arith.addf %43, %49 : vector<8x64xf32>
    %c1_52 = arith.constant 1 : index
    %c0_53 = arith.constant 0 : index
    %c0_54 = arith.constant 0 : index
    %51 = vector.load %arg7[%c1_52, %c0_53, %c0_54] : memref<3x8x8xf32, #tpu.memory_space<vmem>>, vector<1x8x8xf32>
    %52 = vector.shape_cast %51 : vector<1x8x8xf32> to vector<8x8xf32>
    %cst_55 = arith.constant dense<0.000000e+00> : vector<8x64xf32>
    %53 = tpu.matmul %52, %42, %cst_55 {dimension_numbers = #tpu.dot_dimension_numbers<[1], [0], [0], [1], [0, 0, 1, 1], [], []>} : vector<8x8xf32>, vector<8x64xf32>, vector<8x64xf32> -> vector<8x64xf32>
    %c1_56 = arith.constant 1 : index
    %c0_57 = arith.constant 0 : index
    %c0_58 = arith.constant 0 : index
    %54 = vector.load %arg8[%c1_56, %c0_57, %c0_58] : memref<3x64x64xf32, #tpu.memory_space<vmem>>, vector<1x64x64xf32>
    %55 = vector.shape_cast %54 : vector<1x64x64xf32> to vector<64x64xf32>
    %cst_59 = arith.constant dense<0.000000e+00> : vector<8x64xf32>
    %56 = tpu.matmul %53, %55, %cst_59 {dimension_numbers = #tpu.dot_dimension_numbers<[1], [0], [0], [1], [0, 0, 1, 1], [], []>} : vector<8x64xf32>, vector<64x64xf32>, vector<8x64xf32> -> vector<8x64xf32>
    %57 = arith.addf %50, %56 : vector<8x64xf32>
    %c2_60 = arith.constant 2 : index
    %c0_61 = arith.constant 0 : index
    %c0_62 = arith.constant 0 : index
    %58 = vector.load %arg7[%c2_60, %c0_61, %c0_62] : memref<3x8x8xf32, #tpu.memory_space<vmem>>, vector<1x8x8xf32>
    %59 = vector.shape_cast %58 : vector<1x8x8xf32> to vector<8x8xf32>
    %cst_63 = arith.constant dense<0.000000e+00> : vector<8x64xf32>
    %60 = tpu.matmul %59, %42, %cst_63 {dimension_numbers = #tpu.dot_dimension_numbers<[1], [0], [0], [1], [0, 0, 1, 1], [], []>} : vector<8x8xf32>, vector<8x64xf32>, vector<8x64xf32> -> vector<8x64xf32>
    %c2_64 = arith.constant 2 : index
    %c0_65 = arith.constant 0 : index
    %c0_66 = arith.constant 0 : index
    %61 = vector.load %arg8[%c2_64, %c0_65, %c0_66] : memref<3x64x64xf32, #tpu.memory_space<vmem>>, vector<1x64x64xf32>
    %62 = vector.shape_cast %61 : vector<1x64x64xf32> to vector<64x64xf32>
    %cst_67 = arith.constant dense<0.000000e+00> : vector<8x64xf32>
    %63 = tpu.matmul %60, %62, %cst_67 {dimension_numbers = #tpu.dot_dimension_numbers<[1], [0], [0], [1], [0, 0, 1, 1], [], []>} : vector<8x64xf32>, vector<64x64xf32>, vector<8x64xf32> -> vector<8x64xf32>
    %64 = arith.addf %57, %63 : vector<8x64xf32>
    %c0_68 = arith.constant 0 : index
    %c0_69 = arith.constant 0 : index
    %65 = vector.load %arg9[%c0_68, %c0_69] : memref<1x64xf32, #tpu.memory_space<vmem>>, vector<1x64xf32>
    %66 = vector.broadcast %65 : vector<1x64xf32> to vector<8x64xf32>
    %67 = arith.addf %64, %66 : vector<8x64xf32>
    %cst_70 = arith.constant 0.000000e+00 : f32
    %68 = vector.broadcast %cst_70 : f32 to vector<8x64xf32>
    %69 = arith.maximumf %67, %68 : vector<8x64xf32>
    %c0_71 = arith.constant 0 : index
    %c0_72 = arith.constant 0 : index
    %c0_73 = arith.constant 0 : index
    %70 = vector.load %arg10[%c0_71, %c0_72, %c0_73] : memref<2x64x32xf32, #tpu.memory_space<vmem>>, vector<1x64x32xf32>
    %71 = vector.shape_cast %70 : vector<1x64x32xf32> to vector<64x32xf32>
    %cst_74 = arith.constant dense<0.000000e+00> : vector<8x32xf32>
    %72 = tpu.matmul %69, %71, %cst_74 {dimension_numbers = #tpu.dot_dimension_numbers<[1], [0], [0], [1], [0, 0, 1, 1], [], []>} : vector<8x64xf32>, vector<64x32xf32>, vector<8x32xf32> -> vector<8x32xf32>
    %c1_75 = arith.constant 1 : index
    %c0_76 = arith.constant 0 : index
    %c0_77 = arith.constant 0 : index
    %73 = vector.load %arg10[%c1_75, %c0_76, %c0_77] : memref<2x64x32xf32, #tpu.memory_space<vmem>>, vector<1x64x32xf32>
    %74 = vector.shape_cast %73 : vector<1x64x32xf32> to vector<64x32xf32>
    %cst_78 = arith.constant dense<0.000000e+00> : vector<8x32xf32>
    %75 = tpu.matmul %69, %74, %cst_78 {dimension_numbers = #tpu.dot_dimension_numbers<[1], [0], [0], [1], [0, 0, 1, 1], [], []>} : vector<8x64xf32>, vector<64x32xf32>, vector<8x32xf32> -> vector<8x32xf32>
    %76 = arith.maximumf %72, %75 : vector<8x32xf32>
    %c0_79 = arith.constant 0 : index
    %c0_80 = arith.constant 0 : index
    %c0_81 = arith.constant 0 : index
    %77 = vector.load %arg11[%c0_79, %c0_80, %c0_81] : memref<2x4x8xf32, #tpu.memory_space<vmem>>, vector<1x4x8xf32>
    %78 = vector.shape_cast %77 : vector<1x4x8xf32> to vector<4x8xf32>
    %cst_82 = arith.constant dense<0.000000e+00> : vector<4x32xf32>
    %79 = tpu.matmul %78, %76, %cst_82 {dimension_numbers = #tpu.dot_dimension_numbers<[1], [0], [0], [1], [0, 0, 1, 1], [], []>} : vector<4x8xf32>, vector<8x32xf32>, vector<4x32xf32> -> vector<4x32xf32>
    %c1_83 = arith.constant 1 : index
    %c0_84 = arith.constant 0 : index
    %c0_85 = arith.constant 0 : index
    %80 = vector.load %arg11[%c1_83, %c0_84, %c0_85] : memref<2x4x8xf32, #tpu.memory_space<vmem>>, vector<1x4x8xf32>
    %81 = vector.shape_cast %80 : vector<1x4x8xf32> to vector<4x8xf32>
    %cst_86 = arith.constant dense<0.000000e+00> : vector<4x32xf32>
    %82 = tpu.matmul %81, %76, %cst_86 {dimension_numbers = #tpu.dot_dimension_numbers<[1], [0], [0], [1], [0, 0, 1, 1], [], []>} : vector<4x8xf32>, vector<8x32xf32>, vector<4x32xf32> -> vector<4x32xf32>
    %83 = arith.maximumf %79, %82 : vector<4x32xf32>
    %c0_87 = arith.constant 0 : index
    %c0_88 = arith.constant 0 : index
    %84 = vector.load %arg13[%c0_87, %c0_88] : memref<1x128xf32, #tpu.memory_space<vmem>>, vector<1x128xf32>
    %85 = vector.extract_strided_slice %83 {offsets = [0, 0], sizes = [1, 32], strides = [1, 1]} : vector<4x32xf32> to vector<1x32xf32>
    %c0_89 = arith.constant 0 : index
    %c0_90 = arith.constant 0 : index
    %c0_91 = arith.constant 0 : index
    %86 = vector.load %arg12[%c0_89, %c0_90, %c0_91] : memref<4x32x128xf32, #tpu.memory_space<vmem>>, vector<1x32x128xf32>
    %87 = vector.shape_cast %86 : vector<1x32x128xf32> to vector<32x128xf32>
    %cst_92 = arith.constant dense<0.000000e+00> : vector<1x128xf32>
    %88 = tpu.matmul %85, %87, %cst_92 {dimension_numbers = #tpu.dot_dimension_numbers<[1], [0], [0], [1], [0, 0, 1, 1], [], []>} : vector<1x32xf32>, vector<32x128xf32>, vector<1x128xf32> -> vector<1x128xf32>
    %89 = arith.addf %84, %88 : vector<1x128xf32>
    %90 = vector.extract_strided_slice %83 {offsets = [1, 0], sizes = [1, 32], strides = [1, 1]} : vector<4x32xf32> to vector<1x32xf32>
    %c1_93 = arith.constant 1 : index
    %c0_94 = arith.constant 0 : index
    %c0_95 = arith.constant 0 : index
    %91 = vector.load %arg12[%c1_93, %c0_94, %c0_95] : memref<4x32x128xf32, #tpu.memory_space<vmem>>, vector<1x32x128xf32>
    %92 = vector.shape_cast %91 : vector<1x32x128xf32> to vector<32x128xf32>
    %cst_96 = arith.constant dense<0.000000e+00> : vector<1x128xf32>
    %93 = tpu.matmul %90, %92, %cst_96 {dimension_numbers = #tpu.dot_dimension_numbers<[1], [0], [0], [1], [0, 0, 1, 1], [], []>} : vector<1x32xf32>, vector<32x128xf32>, vector<1x128xf32> -> vector<1x128xf32>
    %94 = arith.addf %89, %93 : vector<1x128xf32>
    %95 = vector.extract_strided_slice %83 {offsets = [2, 0], sizes = [1, 32], strides = [1, 1]} : vector<4x32xf32> to vector<1x32xf32>
    %c2_97 = arith.constant 2 : index
    %c0_98 = arith.constant 0 : index
    %c0_99 = arith.constant 0 : index
    %96 = vector.load %arg12[%c2_97, %c0_98, %c0_99] : memref<4x32x128xf32, #tpu.memory_space<vmem>>, vector<1x32x128xf32>
    %97 = vector.shape_cast %96 : vector<1x32x128xf32> to vector<32x128xf32>
    %cst_100 = arith.constant dense<0.000000e+00> : vector<1x128xf32>
    %98 = tpu.matmul %95, %97, %cst_100 {dimension_numbers = #tpu.dot_dimension_numbers<[1], [0], [0], [1], [0, 0, 1, 1], [], []>} : vector<1x32xf32>, vector<32x128xf32>, vector<1x128xf32> -> vector<1x128xf32>
    %99 = arith.addf %94, %98 : vector<1x128xf32>
    %100 = vector.extract_strided_slice %83 {offsets = [3, 0], sizes = [1, 32], strides = [1, 1]} : vector<4x32xf32> to vector<1x32xf32>
    %c3 = arith.constant 3 : index
    %c0_101 = arith.constant 0 : index
    %c0_102 = arith.constant 0 : index
    %101 = vector.load %arg12[%c3, %c0_101, %c0_102] : memref<4x32x128xf32, #tpu.memory_space<vmem>>, vector<1x32x128xf32>
    %102 = vector.shape_cast %101 : vector<1x32x128xf32> to vector<32x128xf32>
    %cst_103 = arith.constant dense<0.000000e+00> : vector<1x128xf32>
    %103 = tpu.matmul %100, %102, %cst_103 {dimension_numbers = #tpu.dot_dimension_numbers<[1], [0], [0], [1], [0, 0, 1, 1], [], []>} : vector<1x32xf32>, vector<32x128xf32>, vector<1x128xf32> -> vector<1x128xf32>
    %104 = arith.addf %99, %103 : vector<1x128xf32>
    %c0_104 = arith.constant 0 : index
    %c0_105 = arith.constant 0 : index
    %c0_106 = arith.constant 0 : index
    %105 = vector.load %arg14[%c0_104, %c0_105, %c0_106] : memref<1x1x128xf32, #tpu.memory_space<vmem>>, vector<1x1x128xf32>
    %106 = vector.shape_cast %105 : vector<1x1x128xf32> to vector<1x128xf32>
    %107 = vector.shape_cast %104 : vector<1x128xf32> to vector<1x1x128xf32>
    tpu.vector_store %arg14[%c0_104, %c0_105, %c0_106], %107 {strides = array<i32>} : memref<1x1x128xf32, #tpu.memory_space<vmem>>, vector<1x1x128xf32>,
    return
  }
  func.func @transform_0(%arg0: i32) -> (i32, i32, i32) {
    %c0_i32 = arith.constant 0 : i32
    %c0_i32_0 = arith.constant 0 : i32
    %c0_i32_1 = arith.constant 0 : i32
    return %arg0, %c0_i32, %c0_i32_0 : i32, i32, i32
  }
  func.func @transform_1(%arg0: i32) -> (i32, i32, i32) {
    %c0_i32 = arith.constant 0 : i32
    %c0_i32_0 = arith.constant 0 : i32
    %c0_i32_1 = arith.constant 0 : i32
    %c0_i32_2 = arith.constant 0 : i32
    return %c0_i32, %c0_i32_0, %c0_i32_1 : i32, i32, i32
  }
  func.func @transform_2(%arg0: i32) -> (i32, i32, i32) {
    %c0_i32 = arith.constant 0 : i32
    %c0_i32_0 = arith.constant 0 : i32
    %c0_i32_1 = arith.constant 0 : i32
    %c0_i32_2 = arith.constant 0 : i32
    return %c0_i32, %c0_i32_0, %c0_i32_1 : i32, i32, i32
  }
  func.func @transform_3(%arg0: i32) -> (i32, i32) {
    %c0_i32 = arith.constant 0 : i32
    %c0_i32_0 = arith.constant 0 : i32
    %c0_i32_1 = arith.constant 0 : i32
    return %c0_i32, %c0_i32_0 : i32, i32
  }
  func.func @transform_4(%arg0: i32) -> (i32, i32, i32) {
    %c0_i32 = arith.constant 0 : i32
    %c0_i32_0 = arith.constant 0 : i32
    %c0_i32_1 = arith.constant 0 : i32
    %c0_i32_2 = arith.constant 0 : i32
    return %c0_i32, %c0_i32_0, %c0_i32_1 : i32, i32, i32
  }
  func.func @transform_5(%arg0: i32) -> (i32, i32, i32) {
    %c0_i32 = arith.constant 0 : i32
    %c0_i32_0 = arith.constant 0 : i32
    %c0_i32_1 = arith.constant 0 : i32
    %c0_i32_2 = arith.constant 0 : i32
    return %c0_i32, %c0_i32_0, %c0_i32_1 : i32, i32, i32
  }
  func.func @transform_6(%arg0: i32) -> (i32, i32, i32) {
    %c0_i32 = arith.constant 0 : i32
    %c0_i32_0 = arith.constant 0 : i32
    %c0_i32_1 = arith.constant 0 : i32
    %c0_i32_2 = arith.constant 0 : i32
    return %c0_i32, %c0_i32_0, %c0_i32_1 : i32, i32, i32
  }
  func.func @transform_7(%arg0: i32) -> (i32, i32, i32) {
    %c0_i32 = arith.constant 0 : i32
    %c0_i32_0 = arith.constant 0 : i32
    %c0_i32_1 = arith.constant 0 : i32
    %c0_i32_2 = arith.constant 0 : i32
    return %c0_i32, %c0_i32_0, %c0_i32_1 : i32, i32, i32
  }
  func.func @transform_8(%arg0: i32) -> (i32, i32) {
    %c0_i32 = arith.constant 0 : i32
    %c0_i32_0 = arith.constant 0 : i32
    %c0_i32_1 = arith.constant 0 : i32
    return %c0_i32, %c0_i32_0 : i32, i32
  }
  func.func @transform_9(%arg0: i32) -> (i32, i32, i32) {
    %c0_i32 = arith.constant 0 : i32
    %c0_i32_0 = arith.constant 0 : i32
    %c0_i32_1 = arith.constant 0 : i32
    %c0_i32_2 = arith.constant 0 : i32
    return %c0_i32, %c0_i32_0, %c0_i32_1 : i32, i32, i32
  }
  func.func @transform_10(%arg0: i32) -> (i32, i32, i32) {
    %c0_i32 = arith.constant 0 : i32
    %c0_i32_0 = arith.constant 0 : i32
    %c0_i32_1 = arith.constant 0 : i32
    %c0_i32_2 = arith.constant 0 : i32
    return %c0_i32, %c0_i32_0, %c0_i32_1 : i32, i32, i32
  }
  func.func @transform_11(%arg0: i32) -> (i32, i32, i32) {
    %c0_i32 = arith.constant 0 : i32
    %c0_i32_0 = arith.constant 0 : i32
    %c0_i32_1 = arith.constant 0 : i32
    %c0_i32_2 = arith.constant 0 : i32
    return %c0_i32, %c0_i32_0, %c0_i32_1 : i32, i32, i32
  }
  func.func @transform_12(%arg0: i32) -> (i32, i32) {
    %c0_i32 = arith.constant 0 : i32
    %c0_i32_0 = arith.constant 0 : i32
    %c0_i32_1 = arith.constant 0 : i32
    return %c0_i32, %c0_i32_0 : i32, i32
  }
  func.func @transform_13(%arg0: i32) -> (i32, i32, i32) {
    %c0_i32 = arith.constant 0 : i32
    %c0_i32_0 = arith.constant 0 : i32
    %c0_i32_1 = arith.constant 0 : i32
    return %arg0, %c0_i32, %c0_i32_0 : i32, i32, i32
  }
}

</mosaic_0001>

<llo_original>
// kernel: tpu_custom_call.1
$region0: #{tpu_custom_call.1}
  #allocation0 [shape = 'u32[]', space=smem, size = 0x4, offset = 0x4, fixed_abs, tag = 'smem constant byte address 0x4 - core index']
  #allocation1 [shape = 'u32[144,128]{1,0:T(1,128)}', space=vmem, size = 0x12000, scoped, tag = 'internal scratch']
  %s0 = inlined_call_operand.hbm [shape: f32[2,16,64], index: 0, kind: input, shape index: {}]
  %s1 = inlined_call_operand.vmem [shape: f32[3,16,16], index: 1, kind: input, shape index: {}]
  %s2 = inlined_call_operand.vmem [shape: f32[3,64,128], index: 2, kind: input, shape index: {}]
  %s3 = inlined_call_operand.vmem [shape: f32[1,128], index: 3, kind: input, shape index: {}]
  %s4 = inlined_call_operand.vmem [shape: f32[2,128,64], index: 4, kind: input, shape index: {}]
  %s5 = inlined_call_operand.hbm [shape: f32[2,8,16], index: 5, kind: input, shape index: {}]
  %s6 = inlined_call_operand.vmem [shape: f32[3,8,8], index: 6, kind: input, shape index: {}]
  %s7 = inlined_call_operand.vmem [shape: f32[3,64,64], index: 7, kind: input, shape index: {}]
  %s8 = inlined_call_operand.vmem [shape: f32[1,64], index: 8, kind: input, shape index: {}]
  %s9 = inlined_call_operand.vmem [shape: f32[2,64,32], index: 9, kind: input, shape index: {}]
  %s10 = inlined_call_operand.vmem [shape: f32[2,4,8], index: 10, kind: input, shape index: {}]
  %s11 = inlined_call_operand.hbm [shape: f32[4,32,128], index: 11, kind: input, shape index: {}]
  %s12 = inlined_call_operand.vmem [shape: f32[1,128], index: 12, kind: input, shape index: {}]
  %s13 = inlined_call_operand.hbm [shape: f32[2,1,128], index: 13, kind: output, shape index: {}]
  %s14 = sld [smem:[#allocation0]]
  $region97: #{tpu_custom_call.1} parent=0
    _
  %s16 = ssub.s32 1, %s14
  %s17 = scalar_select 0, %s16, %s14
  $region1: #{tpu_custom_call.1} parent=0
    #allocation2 [shape = 'u8[16384]{0}', space=vmem, size = 0x4000, scoped, tag = 'input window, operand 0']
    #allocation3 [shape = 's32[2]{0}', space=sflag, size = 0x8, scoped, tag = 'scoped memory for tpu_custom_call.1']
    #allocation4 [shape = 's32[2]{0}', space=sflag, size = 0x8, scoped, tag = 'scoped memory for tpu_custom_call.1']
    #allocation5 [shape = 'u8[8192]{0}', space=vmem, size = 0x2000, scoped, tag = 'input window, operand 5, single buffered']
    #allocation6 [shape = 's32[1]{0}', space=sflag, size = 0x4, scoped, tag = 'scoped memory for tpu_custom_call.1']
    #allocation7 [shape = 'u8[65536]{0}', space=vmem, size = 0x10000, scoped, tag = 'input window, operand 11, single buffered']
    #allocation8 [shape = 'u8[1024]{0}', space=vmem, size = 0x400, scoped, tag = 'output window, operand 0']
    %18 = vsyncpa [#allocation3], 0
    %s19 = scalar_lea.sflag [#allocation3], 1
    %20 = vsyncpa %s19, 0
    %21 = vsyncpa [#allocation6], 0
    %22 = vsyncpa [#allocation4], 0
    %s23 = scalar_lea.sflag [#allocation4], 1
    %24 = vsyncpa %s23, 0
    loop: start=0, step=1, limit=4
    $region2: #{tpu_custom_call.1} parent=1 // loop_pre_header
      _
    $region3: #{tpu_custom_call.1} parent=1 // loop_header
      %s26 = sphi 0, %s30
      %p27 = scmp.ge.s32.totalorder %s26, 4
      %s36 = sphi 0, %s38
      %s39 = sphi 0, %s36
      %s40 = sphi 0, %s39
      %s56 = sphi 0, %s40
      %s60 = sphi 0, %s60
      %s62 = sphi 0, %s60
      %s63 = sphi 0, %s62
      %s77 = sphi 0, %s63
      %s81 = sphi 0, %s81
      %s83 = sphi 0, %s81
      %s84 = sphi 0, %s83
      %s98 = sphi 0, %s84
      %s102 = sphi 0, %s102
      %s104 = sphi 0, %s102
      %s105 = sphi 0, %s104
      %s119 = sphi 0, %s105
      %s123 = sphi 0, %s123
      %s125 = sphi 0, %s123
      %s126 = sphi 0, %s125
      %s140 = sphi 0, %s126
      %s144 = sphi 0, %s144
      %s146 = sphi 0, %s144
      %s147 = sphi 0, %s146
      %s161 = sphi 0, %s147
      %s165 = sphi 0, %s165
      %s167 = sphi 0, %s165
      %s168 = sphi 0, %s167
      %s182 = sphi 0, %s168
      %s186 = sphi 0, %s186
      %s188 = sphi 0, %s186
      %s189 = sphi 0, %s188
      %s203 = sphi 0, %s189
      %s207 = sphi 0, %s207
      %s209 = sphi 0, %s207
      %s210 = sphi 0, %s209
      %s224 = sphi 0, %s210
      %s228 = sphi 0, %s228
      %s230 = sphi 0, %s228
      %s231 = sphi 0, %s230
      %s245 = sphi 0, %s231
      %s249 = sphi 0, %s249
      %s251 = sphi 0, %s249
      %s252 = sphi 0, %s251
      %s266 = sphi 0, %s252
      %s270 = sphi 0, %s270
      %s272 = sphi 0, %s270
      %s273 = sphi 0, %s272
      %s287 = sphi 0, %s273
      %s291 = sphi 0, %s291
      %s293 = sphi 0, %s291
      %s294 = sphi 0, %s293
      %s308 = sphi 0, %s294
      %s314 = sphi 0, %s316
      %s317 = sphi 0, %s314
      %s318 = sphi 0, %s317
      %s334 = sphi 0, %s318
    $region4: #{tpu_custom_call.1} parent=1 // loop_header_branch
      %29 = sbr.rel (%p27) target = $region8
    $region5: #{tpu_custom_call.1} parent=1 // loop_body
      %s31 = ssub.s32 %s26, 1
      %s32 = ssub.s32 %s26, 2
      %s33 = sadd.s32 %s26, 1
      %s34 = ssub.s32 %s26, %s33
      %p35 = scmp.eq.s32.totalorder %s34, 0
      %s37 = sadd.s32 %s36, 1
      %s38 = scalar_select %p35, %s36, %s37
      %p41 = pneg %p35
      %p42 = scmp.eq.s32.totalorder %s26, 1
      %p43 = por %p41, %p42
      %p44 = scmp.ne.s32.totalorder %s36, %s39
      %p45 = scmp.eq.s32.totalorder %s26, 0
      %p46 = por %p44, %p45
      %p47 = scmp.ne.s32.totalorder %s36, %s39
      %p48 = scmp.eq.s32.totalorder %s31, 1
      %p49 = por %p47, %p48
      %p50 = scmp.ne.s32.totalorder %s39, %s40
      %p51 = scmp.eq.s32.totalorder %s31, 0
      %p52 = por %p50, %p51
      %p53 = scmp.ne.s32.totalorder %s39, %s40
      %p54 = scmp.eq.s32.totalorder %s32, 1
      %p55 = por %p53, %p54
      %p57 = scmp.ne.s32.totalorder %s40, %s56
      %p58 = scmp.eq.s32.totalorder %s32, 0
      %p59 = por %p57, %p58
      %s61 = sadd.s32 %s60, 1
      %p64 = scmp.eq.s32.totalorder %s26, 1
      %p65 = scmp.ne.s32.totalorder %s60, %s62
      %p66 = scmp.eq.s32.totalorder %s26, 0
      %p67 = por %p65, %p66
      %p68 = scmp.ne.s32.totalorder %s60, %s62
      %p69 = scmp.eq.s32.totalorder %s31, 1
      %p70 = por %p68, %p69
      %p71 = scmp.ne.s32.totalorder %s62, %s63
      %p72 = scmp.eq.s32.totalorder %s31, 0
      %p73 = por %p71, %p72
      %p74 = scmp.ne.s32.totalorder %s62, %s63
      %p75 = scmp.eq.s32.totalorder %s32, 1
      %p76 = por %p74, %p75
      %p78 = scmp.ne.s32.totalorder %s63, %s77
      %p79 = scmp.eq.s32.totalorder %s32, 0
      %p80 = por %p78, %p79
      %s82 = sadd.s32 %s81, 1
      %p85 = scmp.eq.s32.totalorder %s26, 1
      %p86 = scmp.ne.s32.totalorder %s81, %s83
      %p87 = scmp.eq.s32.totalorder %s26, 0
      %p88 = por %p86, %p87
      %p89 = scmp.ne.s32.totalorder %s81, %s83
      %p90 = scmp.eq.s32.totalorder %s31, 1
      %p91 = por %p89, %p90
      %p92 = scmp.ne.s32.totalorder %s83, %s84
      %p93 = scmp.eq.s32.totalorder %s31, 0
      %p94 = por %p92, %p93
      %p95 = scmp.ne.s32.totalorder %s83, %s84
      %p96 = scmp.eq.s32.totalorder %s32, 1
      %p97 = por %p95, %p96
      %p99 = scmp.ne.s32.totalorder %s84, %s98
      %p100 = scmp.eq.s32.totalorder %s32, 0
      %p101 = por %p99, %p100
      %s103 = sadd.s32 %s102, 1
      %p106 = scmp.eq.s32.totalorder %s26, 1
      %p107 = scmp.ne.s32.totalorder %s102, %s104
      %p108 = scmp.eq.s32.totalorder %s26, 0
      %p109 = por %p107, %p108
      %p110 = scmp.ne.s32.totalorder %s102, %s104
      %p111 = scmp.eq.s32.totalorder %s31, 1
      %p112 = por %p110, %p111
      %p113 = scmp.ne.s32.totalorder %s104, %s105
      %p114 = scmp.eq.s32.totalorder %s31, 0
      %p115 = por %p113, %p114
      %p116 = scmp.ne.s32.totalorder %s104, %s105
      %p117 = scmp.eq.s32.totalorder %s32, 1
      %p118 = por %p116, %p117
      %p120 = scmp.ne.s32.totalorder %s105, %s119
      %p121 = scmp.eq.s32.totalorder %s32, 0
      %p122 = por %p120, %p121
      %s124 = sadd.s32 %s123, 1
      %p127 = scmp.eq.s32.totalorder %s26, 1
      %p128 = scmp.ne.s32.totalorder %s123, %s125
      %p129 = scmp.eq.s32.totalorder %s26, 0
      %p130 = por %p128, %p129
      %p131 = scmp.ne.s32.totalorder %s123, %s125
      %p132 = scmp.eq.s32.totalorder %s31, 1
      %p133 = por %p131, %p132
      %p134 = scmp.ne.s32.totalorder %s125, %s126
      %p135 = scmp.eq.s32.totalorder %s31, 0
      %p136 = por %p134, %p135
      %p137 = scmp.ne.s32.totalorder %s125, %s126
      %p138 = scmp.eq.s32.totalorder %s32, 1
      %p139 = por %p137, %p138
      %p141 = scmp.ne.s32.totalorder %s126, %s140
      %p142 = scmp.eq.s32.totalorder %s32, 0
      %p143 = por %p141, %p142
      %s145 = sadd.s32 %s144, 1
      %p148 = scmp.eq.s32.totalorder %s26, 1
      %p149 = scmp.ne.s32.totalorder %s144, %s146
      %p150 = scmp.eq.s32.totalorder %s26, 0
      %p151 = por %p149, %p150
      %p152 = scmp.ne.s32.totalorder %s144, %s146
      %p153 = scmp.eq.s32.totalorder %s31, 1
      %p154 = por %p152, %p153
      %p155 = scmp.ne.s32.totalorder %s146, %s147
      %p156 = scmp.eq.s32.totalorder %s31, 0
      %p157 = por %p155, %p156
      %p158 = scmp.ne.s32.totalorder %s146, %s147
      %p159 = scmp.eq.s32.totalorder %s32, 1
      %p160 = por %p158, %p159
      %p162 = scmp.ne.s32.totalorder %s147, %s161
      %p163 = scmp.eq.s32.totalorder %s32, 0
      %p164 = por %p162, %p163
      %s166 = sadd.s32 %s165, 1
      %p169 = scmp.eq.s32.totalorder %s26, 1
      %p170 = scmp.ne.s32.totalorder %s165, %s167
      %p171 = scmp.eq.s32.totalorder %s26, 0
      %p172 = por %p170, %p171
      %p173 = scmp.ne.s32.totalorder %s165, %s167
      %p174 = scmp.eq.s32.totalorder %s31, 1
      %p175 = por %p173, %p174
      %p176 = scmp.ne.s32.totalorder %s167, %s168
      %p177 = scmp.eq.s32.totalorder %s31, 0
      %p178 = por %p176, %p177
      %p179 = scmp.ne.s32.totalorder %s167, %s168
      %p180 = scmp.eq.s32.totalorder %s32, 1
      %p181 = por %p179, %p180
      %p183 = scmp.ne.s32.totalorder %s168, %s182
      %p184 = scmp.eq.s32.totalorder %s32, 0
      %p185 = por %p183, %p184
      %s187 = sadd.s32 %s186, 1
      %p190 = scmp.eq.s32.totalorder %s26, 1
      %p191 = scmp.ne.s32.totalorder %s186, %s188
      %p192 = scmp.eq.s32.totalorder %s26, 0
      %p193 = por %p191, %p192
      %p194 = scmp.ne.s32.totalorder %s186, %s188
      %p195 = scmp.eq.s32.totalorder %s31, 1
      %p196 = por %p194, %p195
      %p197 = scmp.ne.s32.totalorder %s188, %s189
      %p198 = scmp.eq.s32.totalorder %s31, 0
      %p199 = por %p197, %p198
      %p200 = scmp.ne.s32.totalorder %s188, %s189
      %p201 = scmp.eq.s32.totalorder %s32, 1
      %p202 = por %p200, %p201
      %p204 = scmp.ne.s32.totalorder %s189, %s203
      %p205 = scmp.eq.s32.totalorder %s32, 0
      %p206 = por %p204, %p205
      %s208 = sadd.s32 %s207, 1
      %p211 = scmp.eq.s32.totalorder %s26, 1
      %p212 = scmp.ne.s32.totalorder %s207, %s209
      %p213 = scmp.eq.s32.totalorder %s26, 0
      %p214 = por %p212, %p213
      %p215 = scmp.ne.s32.totalorder %s207, %s209
      %p216 = scmp.eq.s32.totalorder %s31, 1
      %p217 = por %p215, %p216
      %p218 = scmp.ne.s32.totalorder %s209, %s210
      %p219 = scmp.eq.s32.totalorder %s31, 0
      %p220 = por %p218, %p219
      %p221 = scmp.ne.s32.totalorder %s209, %s210
      %p222 = scmp.eq.s32.totalorder %s32, 1
      %p223 = por %p221, %p222
      %p225 = scmp.ne.s32.totalorder %s210, %s224
      %p226 = scmp.eq.s32.totalorder %s32, 0
      %p227 = por %p225, %p226
      %s229 = sadd.s32 %s228, 1
      %p232 = scmp.eq.s32.totalorder %s26, 1
      %p233 = scmp.ne.s32.totalorder %s228, %s230
      %p234 = scmp.eq.s32.totalorder %s26, 0
      %p235 = por %p233, %p234
      %p236 = scmp.ne.s32.totalorder %s228, %s230
      %p237 = scmp.eq.s32.totalorder %s31, 1
      %p238 = por %p236, %p237
      %p239 = scmp.ne.s32.totalorder %s230, %s231
      %p240 = scmp.eq.s32.totalorder %s31, 0
      %p241 = por %p239, %p240
      %p242 = scmp.ne.s32.totalorder %s230, %s231
      %p243 = scmp.eq.s32.totalorder %s32, 1
      %p244 = por %p242, %p243
      %p246 = scmp.ne.s32.totalorder %s231, %s245
      %p247 = scmp.eq.s32.totalorder %s32, 0
      %p248 = por %p246, %p247
      %s250 = sadd.s32 %s249, 1
      %p253 = scmp.eq.s32.totalorder %s26, 1
      %p254 = scmp.ne.s32.totalorder %s249, %s251
      %p255 = scmp.eq.s32.totalorder %s26, 0
      %p256 = por %p254, %p255
      %p257 = scmp.ne.s32.totalorder %s249, %s251
      %p258 = scmp.eq.s32.totalorder %s31, 1
      %p259 = por %p257, %p258
      %p260 = scmp.ne.s32.totalorder %s251, %s252
      %p261 = scmp.eq.s32.totalorder %s31, 0
      %p262 = por %p260, %p261
      %p263 = scmp.ne.s32.totalorder %s251, %s252
      %p264 = scmp.eq.s32.totalorder %s32, 1
      %p265 = por %p263, %p264
      %p267 = scmp.ne.s32.totalorder %s252, %s266
      %p268 = scmp.eq.s32.totalorder %s32, 0
      %p269 = por %p267, %p268
      %s271 = sadd.s32 %s270, 1
      %p274 = scmp.eq.s32.totalorder %s26, 1
      %p275 = scmp.ne.s32.totalorder %s270, %s272
      %p276 = scmp.eq.s32.totalorder %s26, 0
      %p277 = por %p275, %p276
      %p278 = scmp.ne.s32.totalorder %s270, %s272
      %p279 = scmp.eq.s32.totalorder %s31, 1
      %p280 = por %p278, %p279
      %p281 = scmp.ne.s32.totalorder %s272, %s273
      %p282 = scmp.eq.s32.totalorder %s31, 0
      %p283 = por %p281, %p282
      %p284 = scmp.ne.s32.totalorder %s272, %s273
      %p285 = scmp.eq.s32.totalorder %s32, 1
      %p286 = por %p284, %p285
      %p288 = scmp.ne.s32.totalorder %s273, %s287
      %p289 = scmp.eq.s32.totalorder %s32, 0
      %p290 = por %p288, %p289
      %s292 = sadd.s32 %s291, 1
      %p295 = scmp.eq.s32.totalorder %s26, 1
      %p296 = scmp.ne.s32.totalorder %s291, %s293
      %p297 = scmp.eq.s32.totalorder %s26, 0
      %p298 = por %p296, %p297
      %p299 = scmp.ne.s32.totalorder %s291, %s293
      %p300 = scmp.eq.s32.totalorder %s31, 1
      %p301 = por %p299, %p300
      %p302 = scmp.ne.s32.totalorder %s293, %s294
      %p303 = scmp.eq.s32.totalorder %s31, 0
      %p304 = por %p302, %p303
      %p305 = scmp.ne.s32.totalorder %s293, %s294
      %p306 = scmp.eq.s32.totalorder %s32, 1
      %p307 = por %p305, %p306
      %p309 = scmp.ne.s32.totalorder %s294, %s308
      %p310 = scmp.eq.s32.totalorder %s32, 0
      %p311 = por %p309, %p310
      %s312 = ssub.s32 %s26, %s33
      %p313 = scmp.eq.s32.totalorder %s312, 0
      %s315 = sadd.s32 %s314, 1
      %s316 = scalar_select %p313, %s314, %s315
      %p319 = pneg %p313
      %p320 = scmp.eq.s32.totalorder %s26, 1
      %p321 = por %p319, %p320
      %p322 = scmp.ne.s32.totalorder %s314, %s317
      %p323 = scmp.eq.s32.totalorder %s26, 0
      %p324 = por %p322, %p323
      %p325 = scmp.ne.s32.totalorder %s314, %s317
      %p326 = scmp.eq.s32.totalorder %s31, 1
      %p327 = por %p325, %p326
      %p328 = scmp.ne.s32.totalorder %s317, %s318
      %p329 = scmp.eq.s32.totalorder %s31, 0
      %p330 = por %p328, %p329
      %p331 = scmp.ne.s32.totalorder %s317, %s318
      %p332 = scmp.eq.s32.totalorder %s32, 1
      %p333 = por %p331, %p332
      %p335 = scmp.ne.s32.totalorder %s318, %s334
      %p336 = scmp.eq.s32.totalorder %s32, 0
      %p337 = por %p335, %p336
      %p338 = scmp.le.s32.totalorder 1, %s26
      %p339 = scmp.lt.s32.totalorder %s26, 3
      %p340 = pnand %p338, %p339
      %p341 = pneg %p340
      // Predicated region
      $region9: #{tpu_custom_call.1} parent=5 // pred_check
        _
      $region10: #{tpu_custom_call.1} parent=5 // pred_check_branch
        %343 = sbr.rel (%p340) target = $region12
      $region11: #{tpu_custom_call.1} parent=5 // pred_region
        %s344 = ssub.s32 %s26, 1
        // Predicated region
        $region13: #{tpu_custom_call.1} parent=11 // pred_check
          %p345 = pneg %p73
        $region14: #{tpu_custom_call.1} parent=11 // pred_check_branch
          %347 = sbr.rel (%p345) target = $region16
        $region15: #{tpu_custom_call.1} parent=11 // pred_region
          _
        $region16: #{tpu_custom_call.1} parent=11 // pred_fallthru
          _
        // Predicated region
        $region17: #{tpu_custom_call.1} parent=11 // pred_check
          %p348 = pneg %p94
        $region18: #{tpu_custom_call.1} parent=11 // pred_check_branch
          %350 = sbr.rel (%p348) target = $region20
        $region19: #{tpu_custom_call.1} parent=11 // pred_region
          _
        $region20: #{tpu_custom_call.1} parent=11 // pred_fallthru
          _
        // Predicated region
        $region21: #{tpu_custom_call.1} parent=11 // pred_check
          %p351 = pneg %p115
        $region22: #{tpu_custom_call.1} parent=11 // pred_check_branch
          %353 = sbr.rel (%p351) target = $region24
        $region23: #{tpu_custom_call.1} parent=11 // pred_region
          _
        $region24: #{tpu_custom_call.1} parent=11 // pred_fallthru
          _
        // Predicated region
        $region25: #{tpu_custom_call.1} parent=11 // pred_check
          %p354 = pneg %p136
        $region26: #{tpu_custom_call.1} parent=11 // pred_check_branch
          %356 = sbr.rel (%p354) target = $region28
        $region27: #{tpu_custom_call.1} parent=11 // pred_region
          _
        $region28: #{tpu_custom_call.1} parent=11 // pred_fallthru
          _
        // Predicated region
        $region29: #{tpu_custom_call.1} parent=11 // pred_check
          %p357 = pneg %p157
        $region30: #{tpu_custom_call.1} parent=11 // pred_check_branch
          %359 = sbr.rel (%p357) target = $region32
        $region31: #{tpu_custom_call.1} parent=11 // pred_region
          %s361 = ssub.s32 256, 256
          %362 = vsyncadd [#allocation6], %s361
          %s363 = sshll.u32 [#allocation5], 4
          %s364 = int_to_ptr.vmem [resolvable:$true] %s363
          %369 = dma.hbm_to_vmem [thread:$0]  %s5, 256, %s364, [#allocation6], 128, 128, 8
        $region32: #{tpu_custom_call.1} parent=11 // pred_fallthru
          _
        // Predicated region
        $region33: #{tpu_custom_call.1} parent=11 // pred_check
          %p370 = pneg %p178
        $region34: #{tpu_custom_call.1} parent=11 // pred_check_branch
          %372 = sbr.rel (%p370) target = $region36
        $region35: #{tpu_custom_call.1} parent=11 // pred_region
          _
        $region36: #{tpu_custom_call.1} parent=11 // pred_fallthru
          _
        // Predicated region
        $region37: #{tpu_custom_call.1} parent=11 // pred_check
          %p373 = pneg %p199
        $region38: #{tpu_custom_call.1} parent=11 // pred_check_branch
          %375 = sbr.rel (%p373) target = $region40
        $region39: #{tpu_custom_call.1} parent=11 // pred_region
          _
        $region40: #{tpu_custom_call.1} parent=11 // pred_fallthru
          _
        // Predicated region
        $region41: #{tpu_custom_call.1} parent=11 // pred_check
          %p376 = pneg %p220
        $region42: #{tpu_custom_call.1} parent=11 // pred_check_branch
          %378 = sbr.rel (%p376) target = $region44
        $region43: #{tpu_custom_call.1} parent=11 // pred_region
          _
        $region44: #{tpu_custom_call.1} parent=11 // pred_fallthru
          _
        // Predicated region
        $region45: #{tpu_custom_call.1} parent=11 // pred_check
          %p379 = pneg %p241
        $region46: #{tpu_custom_call.1} parent=11 // pred_check_branch
          %381 = sbr.rel (%p379) target = $region48
        $region47: #{tpu_custom_call.1} parent=11 // pred_region
          _
        $region48: #{tpu_custom_call.1} parent=11 // pred_fallthru
          _
        // Predicated region
        $region49: #{tpu_custom_call.1} parent=11 // pred_check
          %p382 = pneg %p262
        $region50: #{tpu_custom_call.1} parent=11 // pred_check_branch
          %384 = sbr.rel (%p382) target = $region52
        $region51: #{tpu_custom_call.1} parent=11 // pred_region
          _
        $region52: #{tpu_custom_call.1} parent=11 // pred_fallthru
          _
        // Predicated region
        $region53: #{tpu_custom_call.1} parent=11 // pred_check
          %p385 = pneg %p283
        $region54: #{tpu_custom_call.1} parent=11 // pred_check_branch
          %387 = sbr.rel (%p385) target = $region56
        $region55: #{tpu_custom_call.1} parent=11 // pred_region
          %s389 = ssub.s32 2048, 2048
          %390 = vsyncadd [#allocation6], %s389
          %s391 = sshll.u32 [#allocation7], 4
          %s392 = int_to_ptr.vmem [resolvable:$true] %s391
          %397 = dma.hbm_to_vmem [thread:$0]  %s11, 2048, %s392, [#allocation6], 128, 128, 8
        $region56: #{tpu_custom_call.1} parent=11 // pred_fallthru
          _
        // Predicated region
        $region57: #{tpu_custom_call.1} parent=11 // pred_check
          %p398 = pneg %p304
        $region58: #{tpu_custom_call.1} parent=11 // pred_check_branch
          %400 = sbr.rel (%p398) target = $region60
        $region59: #{tpu_custom_call.1} parent=11 // pred_region
          _
        $region60: #{tpu_custom_call.1} parent=11 // pred_fallthru
          _
      $region12: #{tpu_custom_call.1} parent=5 // pred_fallthru
        _
      %p401 = scmp.lt.s32.totalorder %s26, 2
      // Predicated region
      $region61: #{tpu_custom_call.1} parent=5 // pred_check
        %p402 = pneg %p401
      $region62: #{tpu_custom_call.1} parent=5 // pred_check_branch
        %404 = sbr.rel (%p402) target = $region64
      $region63: #{tpu_custom_call.1} parent=5 // pred_region
        // Predicated region
        $region65: #{tpu_custom_call.1} parent=63 // pred_check
          %p405 = pneg %p46
        $region66: #{tpu_custom_call.1} parent=63 // pred_check_branch
          %407 = sbr.rel (%p405) target = $region68
        $region67: #{tpu_custom_call.1} parent=63 // pred_region
          %s408 = sand.u32 %s36, 1
          %s409 = scalar_lea.sflag [#allocation3], %s408
          %s410 = sand.u32 %s36, 1
          %s411 = smul.addr %s410, 16
          %s412 = scalar_lea.vmem [#allocation2], %s411
          %s414 = ssub.s32 256, 256
          %415 = vsyncadd %s409, %s414
          %s416 = smul.addr %s26, 2
          %s417 = smul.addr %s416, 128
          %s418 = scalar_lea.hbm %s0, %s417
          %s419 = sshll.u32 %s412, 4
          %s420 = int_to_ptr.vmem [resolvable:$true] %s419
          %425 = dma.hbm_to_vmem [thread:$0]  %s418, 256, %s420, %s409, 128, 128, 8
        $region68: #{tpu_custom_call.1} parent=63 // pred_fallthru
          _
      $region64: #{tpu_custom_call.1} parent=5 // pred_fallthru
        _
      %p426 = scmp.le.s32.totalorder 1, %s26
      %p427 = scmp.lt.s32.totalorder %s26, 3
      %p428 = pnand %p426, %p427
      %p429 = pneg %p428
      // Predicated region
      $region69: #{tpu_custom_call.1} parent=5 // pred_check
        _
      $region70: #{tpu_custom_call.1} parent=5 // pred_check_branch
        %431 = sbr.rel (%p428) target = $region72
      $region71: #{tpu_custom_call.1} parent=5 // pred_region
        %s432 = ssub.s32 %s26, 1
        %s433 = sand.u32 %s39, 1
        %s434 = scalar_lea.sflag [#allocation3], %s433
        %s435 = sand.u32 %s39, 1
        %s436 = smul.addr %s435, 16
        %s437 = scalar_lea.vmem [#allocation2], %s436
        // Predicated region
        $region73: #{tpu_custom_call.1} parent=71 // pred_check
          %p438 = pneg %p52
        $region74: #{tpu_custom_call.1} parent=71 // pred_check_branch
          %440 = sbr.rel (%p438) target = $region76
        $region75: #{tpu_custom_call.1} parent=71 // pred_region
          %441 = dma.done %s434, 256
        $region76: #{tpu_custom_call.1} parent=71 // pred_fallthru
          _
        // Predicated region
        $region77: #{tpu_custom_call.1} parent=71 // pred_check
          %p442 = pneg %p157
        $region78: #{tpu_custom_call.1} parent=71 // pred_check_branch
          %444 = sbr.rel (%p442) target = $region80
        $region79: #{tpu_custom_call.1} parent=71 // pred_region
          %445 = dma.done [#allocation6], 256
        $region80: #{tpu_custom_call.1} parent=71 // pred_fallthru
          _
        // Predicated region
        $region81: #{tpu_custom_call.1} parent=71 // pred_check
          %p446 = pneg %p283
        $region82: #{tpu_custom_call.1} parent=71 // pred_check_branch
          %448 = sbr.rel (%p446) target = $region84
        $region83: #{tpu_custom_call.1} parent=71 // pred_region
          %449 = dma.done [#allocation6], 2048
        $region84: #{tpu_custom_call.1} parent=71 // pred_fallthru
          _
        %s450 = sand.u32 %s39, 1
        %s451 = scalar_lea.sflag [#allocation3], %s450
        %s452 = sand.u32 %s39, 1
        %s453 = smul.addr %s452, 16
        %s454 = scalar_lea.vmem [#allocation2], %s453
        %p455 = pneg %p52
        %p456 = pneg %p49
        %p457 = pneg %p73
        %p458 = pneg %p70
        %p459 = pneg %p94
        %p460 = pneg %p91
        %p461 = pneg %p115
        %p462 = pneg %p112
        %p463 = pneg %p136
        %p464 = pneg %p133
        %p465 = pneg %p157
        %p466 = pneg %p154
        %p467 = pneg %p178
        %p468 = pneg %p175
        %p469 = pneg %p199
        %p470 = pneg %p196
        %p471 = pneg %p220
        %p472 = pneg %p217
        %p473 = pneg %p241
        %p474 = pneg %p238
        %p475 = pneg %p262
        %p476 = pneg %p259
        %p477 = pneg %p283
        %p478 = pneg %p280
        %p479 = pneg %p304
        %p480 = pneg %p301
        %p481 = pneg %p330
        %p482 = pneg %p327
        %s483 = sand.u32 %s317, 1
        %s484 = scalar_lea.sflag [#allocation4], %s483
        %s485 = sand.u32 %s317, 1
        %s486 = scalar_lea.vmem [#allocation8], %s485
        %v487 = vld [vmem:[%s437] sm:$0xff]
        %v488 = vld [vmem:[%s437 + $0x8] sm:$0xff]
        %v489 = vld [vmem:[%s1] sm:$0xff]
        %v490 = vld [vmem:[%s1 + $0x8] sm:$0xff]
        %vm491 = vcmask 130048
        %v493 = vsel %vm491, %v489, 0
        %v496 = vsel %vm491, %v490, 0
        %498 = vmatprep.subr.mxu0 0.0
        %499 = vmatpush1.msra.mxu0 %v487
        %500 = vmatprep.subr.mxu0 0.0
        %501 = vmatpush1.msra.mxu0 %v488
        %502 = vmatprep.subr.mxu0 0.0
        %503 = vmatpush1.msra.mxu0 0.0
        %504 = vmatprep.subr.mxu0 0.0
        %505 = vmatpush1.msra.mxu0 0.0
        %506 = vmatprep.subr.mxu0 0.0
        %507 = vmatpush1.msra.mxu0 0.0
        %508 = vmatprep.subr.mxu0 0.0
        %509 = vmatpush1.msra.mxu0 0.0
        %510 = vmatprep.subr.mxu0 0.0
        %511 = vmatpush1.msra.mxu0 0.0
        %512 = vmatprep.subr.mxu0 0.0
        %513 = vmatpush1.msra.mxu0 0.0
        %514 = vmatprep.subr.mxu0 0.0
        %515 = vmatpush1.msra.mxu0 0.0
        %516 = vmatprep.subr.mxu0 0.0
        %517 = vmatpush1.msra.mxu0 0.0
        %518 = vmatprep.subr.mxu0 0.0
        %519 = vmatpush1.msra.mxu0 0.0
        %520 = vmatprep.subr.mxu0 0.0
        %521 = vmatpush1.msra.mxu0 0.0
        %522 = vmatprep.subr.mxu0 0.0
        %523 = vmatpush1.msra.mxu0 0.0
        %524 = vmatprep.subr.mxu0 0.0
        %525 = vmatpush1.msra.mxu0 0.0
        %526 = vmatprep.subr.mxu0 0.0
        %527 = vmatpush1.msra.mxu0 0.0
        %528 = vmatprep.subr.mxu0 0.0
        %529 = vmatpush1.msra.mxu0 0.0
        %530 = vmatprep.subr.mxu0 0.0
        %531 = vmatpush1.msra.mxu0 0.0
        %532 = vmatprep.subr.mxu0 0.0
        %533 = vmatpush1.msra.mxu0 0.0
        %534 = vmatprep.subr.mxu0 0.0
        %535 = vmatpush1.msra.mxu0 0.0
        %536 = vmatprep.subr.mxu0 0.0
        %537 = vmatpush1.msra.mxu0 0.0
        %538 = vmatprep.subr.mxu0 0.0
        %539 = vmatpush1.msra.mxu0 0.0
        %540 = vmatprep.subr.mxu0 0.0
        %541 = vmatpush1.msra.mxu0 0.0
        %542 = vmatprep.subr.mxu0 0.0
        %543 = vmatpush1.msra.mxu0 0.0
        %544 = vmatprep.subr.mxu0 0.0
        %545 = vmatpush1.msra.mxu0 0.0
        %546 = vmatprep.subr.mxu0 0.0
        %547 = vmatpush1.msra.mxu0 0.0
        %548 = vmatprep.subr.mxu0 0.0
        %549 = vmatpush1.msra.mxu0 0.0
        %550 = vmatprep.subr.mxu0 0.0
        %551 = vmatpush1.msra.mxu0 0.0
        %552 = vmatprep.subr.mxu0 0.0
        %553 = vmatpush1.msra.mxu0 0.0
        %554 = vmatprep.subr.mxu0 0.0
        %555 = vmatpush1.msra.mxu0 0.0
        %556 = vmatprep.subr.mxu0 0.0
        %557 = vmatpush1.msra.mxu0 0.0
        %558 = vmatprep.subr.mxu0 0.0
        %559 = vmatpush1.msra.mxu0 0.0
        %560 = vmatprep.subr.mxu0 0.0
        %561 = vmatpush1.msra.mxu0 0.0
        %562 = vmatprep.mubr.f32.mxu0 0.0
        %563 = vmatmul.mubr.f32.gmra.mrb[0].mxu0 %v493
        %v564 = vpop.f32.mrb[0].mxu0
        %v565 = vadd.f32 0.0, %v564
        %v566 = vpop.f32.mrb[0].mxu0
        %567 = vmatprep.mubr.f32.mxu0 0.0
        %568 = vmatmul.mubr.f32.gmra.mrb[0].mxu0 %v496
        %v569 = vpop.f32.mrb[0].mxu0
        %v570 = vadd.f32 0.0, %v569
        %v571 = vpop.f32.mrb[0].mxu0
        %572 = vdwg.mxu0
        %v573 = vld [vmem:[%s2] sm:$0xff]
        %v574 = vld [vmem:[%s2 + $0x8] sm:$0xff]
        %v575 = vld [vmem:[%s2 + $0x10] sm:$0xff]
        %v576 = vld [vmem:[%s2 + $0x18] sm:$0xff]
        %v577 = vld [vmem:[%s2 + $0x20] sm:$0xff]
        %v578 = vld [vmem:[%s2 + $0x28] sm:$0xff]
        %v579 = vld [vmem:[%s2 + $0x30] sm:$0xff]
        %v580 = vld [vmem:[%s2 + $0x38] sm:$0xff]
        %s581 = scalar_lea.vmem %s1, 16
        %v582 = vld [vmem:[%s581] sm:$0xff]
        %v583 = vld [vmem:[%s581 + $0x8] sm:$0xff]
        %v585 = vsel %vm491, %v582, 0
        %v588 = vsel %vm491, %v583, 0
        %590 = vmatprep.subr.mxu0 0.0
        %591 = vmatpush1.msra.mxu0 %v487
        %592 = vmatprep.subr.mxu0 0.0
        %593 = vmatpush1.msra.mxu0 %v488
        %594 = vmatprep.subr.mxu0 0.0
        %595 = vmatpush1.msra.mxu0 0.0
        %596 = vmatprep.subr.mxu0 0.0
        %597 = vmatpush1.msra.mxu0 0.0
        %598 = vmatprep.subr.mxu0 0.0
        %599 = vmatpush1.msra.mxu0 0.0
        %600 = vmatprep.subr.mxu0 0.0
        %601 = vmatpush1.msra.mxu0 0.0
        %602 = vmatprep.subr.mxu0 0.0
        %603 = vmatpush1.msra.mxu0 0.0
        %604 = vmatprep.subr.mxu0 0.0
        %605 = vmatpush1.msra.mxu0 0.0
        %606 = vmatprep.subr.mxu0 0.0
        %607 = vmatpush1.msra.mxu0 0.0
        %608 = vmatprep.subr.mxu0 0.0
        %609 = vmatpush1.msra.mxu0 0.0
        %610 = vmatprep.subr.mxu0 0.0
        %611 = vmatpush1.msra.mxu0 0.0
        %612 = vmatprep.subr.mxu0 0.0
        %613 = vmatpush1.msra.mxu0 0.0
        %614 = vmatprep.subr.mxu0 0.0
        %615 = vmatpush1.msra.mxu0 0.0
        %616 = vmatprep.subr.mxu0 0.0
        %617 = vmatpush1.msra.mxu0 0.0
        %618 = vmatprep.subr.mxu0 0.0
        %619 = vmatpush1.msra.mxu0 0.0
        %620 = vmatprep.subr.mxu0 0.0
        %621 = vmatpush1.msra.mxu0 0.0
        %622 = vmatprep.subr.mxu0 0.0
        %623 = vmatpush1.msra.mxu0 0.0
        %624 = vmatprep.subr.mxu0 0.0
        %625 = vmatpush1.msra.mxu0 0.0
        %626 = vmatprep.subr.mxu0 0.0
        %627 = vmatpush1.msra.mxu0 0.0
        %628 = vmatprep.subr.mxu0 0.0
        %629 = vmatpush1.msra.mxu0 0.0
        %630 = vmatprep.subr.mxu0 0.0
        %631 = vmatpush1.msra.mxu0 0.0
        %632 = vmatprep.subr.mxu0 0.0
        %633 = vmatpush1.msra.mxu0 0.0
        %634 = vmatprep.subr.mxu0 0.0
        %635 = vmatpush1.msra.mxu0 0.0
        %636 = vmatprep.subr.mxu0 0.0
        %637 = vmatpush1.msra.mxu0 0.0
        %638 = vmatprep.subr.mxu0 0.0
        %639 = vmatpush1.msra.mxu0 0.0
        %640 = vmatprep.subr.mxu0 0.0
        %641 = vmatpush1.msra.mxu0 0.0
        %642 = vmatprep.subr.mxu0 0.0
        %643 = vmatpush1.msra.mxu0 0.0
        %644 = vmatprep.subr.mxu0 0.0
        %645 = vmatpush1.msra.mxu0 0.0
        %646 = vmatprep.subr.mxu0 0.0
        %647 = vmatpush1.msra.mxu0 0.0
        %648 = vmatprep.subr.mxu0 0.0
        %649 = vmatpush1.msra.mxu0 0.0
        %650 = vmatprep.subr.mxu0 0.0
        %651 = vmatpush1.msra.mxu0 0.0
        %652 = vmatprep.subr.mxu0 0.0
        %653 = vmatpush1.msra.mxu0 0.0
        %654 = vmatprep.mubr.f32.mxu0 0.0
        %655 = vmatmul.mubr.f32.gmra.mrb[0].mxu0 %v585
        %v656 = vpop.f32.mrb[0].mxu0
        %v657 = vadd.f32 0.0, %v656
        %v658 = vpop.f32.mrb[0].mxu0
        %659 = vmatprep.mubr.f32.mxu0 0.0
        %660 = vmatmul.mubr.f32.gmra.mrb[0].mxu0 %v588
        %v661 = vpop.f32.mrb[0].mxu0
        %v662 = vadd.f32 0.0, %v661
        %v663 = vpop.f32.mrb[0].mxu0
        %664 = vdwg.mxu0
        %s665 = scalar_lea.vmem %s2, 64
        %v666 = vld [vmem:[%s665] sm:$0xff]
        %v667 = vld [vmem:[%s665 + $0x8] sm:$0xff]
        %v668 = vld [vmem:[%s665 + $0x10] sm:$0xff]
        %v669 = vld [vmem:[%s665 + $0x18] sm:$0xff]
        %v670 = vld [vmem:[%s665 + $0x20] sm:$0xff]
        %v671 = vld [vmem:[%s665 + $0x28] sm:$0xff]
        %v672 = vld [vmem:[%s665 + $0x30] sm:$0xff]
        %v673 = vld [vmem:[%s665 + $0x38] sm:$0xff]
        %vm674 = vcmask 523264
        %v676 = vsel %vm674, %v657, 0
        %v679 = vsel %vm674, %v662, 0
        %681 = vmatprep.subr.mxu0 0.0
        %682 = vmatpush1.msra.mxu0 %v666
        %683 = vmatprep.subr.mxu0 0.0
        %684 = vmatpush1.msra.mxu0 %v667
        %685 = vmatprep.subr.mxu0 0.0
        %686 = vmatpush1.msra.mxu0 %v668
        %687 = vmatprep.subr.mxu0 0.0
        %688 = vmatpush1.msra.mxu0 %v669
        %689 = vmatprep.subr.mxu0 0.0
        %690 = vmatpush1.msra.mxu0 %v670
        %691 = vmatprep.subr.mxu0 0.0
        %692 = vmatpush1.msra.mxu0 %v671
        %693 = vmatprep.subr.mxu0 0.0
        %694 = vmatpush1.msra.mxu0 %v672
        %695 = vmatprep.subr.mxu0 0.0
        %696 = vmatpush1.msra.mxu0 %v673
        %697 = vmatprep.subr.mxu0 0.0
        %698 = vmatpush1.msra.mxu0 0.0
        %699 = vmatprep.subr.mxu0 0.0
        %700 = vmatpush1.msra.mxu0 0.0
        %701 = vmatprep.subr.mxu0 0.0
        %702 = vmatpush1.msra.mxu0 0.0
        %703 = vmatprep.subr.mxu0 0.0
        %704 = vmatpush1.msra.mxu0 0.0
        %705 = vmatprep.subr.mxu0 0.0
        %706 = vmatpush1.msra.mxu0 0.0
        %707 = vmatprep.subr.mxu0 0.0
        %708 = vmatpush1.msra.mxu0 0.0
        %709 = vmatprep.subr.mxu0 0.0
        %710 = vmatpush1.msra.mxu0 0.0
        %711 = vmatprep.subr.mxu0 0.0
        %712 = vmatpush1.msra.mxu0 0.0
        %713 = vmatprep.subr.mxu0 0.0
        %714 = vmatpush1.msra.mxu0 0.0
        %715 = vmatprep.subr.mxu0 0.0
        %716 = vmatpush1.msra.mxu0 0.0
        %717 = vmatprep.subr.mxu0 0.0
        %718 = vmatpush1.msra.mxu0 0.0
        %719 = vmatprep.subr.mxu0 0.0
        %720 = vmatpush1.msra.mxu0 0.0
        %721 = vmatprep.subr.mxu0 0.0
        %722 = vmatpush1.msra.mxu0 0.0
        %723 = vmatprep.subr.mxu0 0.0
        %724 = vmatpush1.msra.mxu0 0.0
        %725 = vmatprep.subr.mxu0 0.0
        %726 = vmatpush1.msra.mxu0 0.0
        %727 = vmatprep.subr.mxu0 0.0
        %728 = vmatpush1.msra.mxu0 0.0
        %729 = vmatprep.subr.mxu0 0.0
        %730 = vmatpush1.msra.mxu0 0.0
        %731 = vmatprep.subr.mxu0 0.0
        %732 = vmatpush1.msra.mxu0 0.0
        %733 = vmatprep.subr.mxu0 0.0
        %734 = vmatpush1.msra.mxu0 0.0
        %735 = vmatprep.subr.mxu0 0.0
        %736 = vmatpush1.msra.mxu0 0.0
        %737 = vmatprep.subr.mxu0 0.0
        %738 = vmatpush1.msra.mxu0 0.0
        %739 = vmatprep.subr.mxu0 0.0
        %740 = vmatpush1.msra.mxu0 0.0
        %741 = vmatprep.subr.mxu0 0.0
        %742 = vmatpush1.msra.mxu0 0.0
        %743 = vmatprep.subr.mxu0 0.0
        %744 = vmatpush1.msra.mxu0 0.0
        %745 = vmatprep.mubr.f32.mxu0 0.0
        %746 = vmatmul.mubr.f32.gmra.mrb[0].mxu0 %v676
        %v747 = vpop.f32.mrb[0].mxu0
        %v748 = vadd.f32 0.0, %v747
        %v749 = vpop.f32.mrb[0].mxu0
        %750 = vmatprep.mubr.f32.mxu0 0.0
        %751 = vmatmul.mubr.f32.gmra.mrb[0].mxu0 %v679
        %v752 = vpop.f32.mrb[0].mxu0
        %v753 = vadd.f32 0.0, %v752
        %v754 = vpop.f32.mrb[0].mxu0
        %755 = vdwg.mxu0
        %v757 = vsel %vm674, %v565, 0
        %v760 = vsel %vm674, %v570, 0
        %762 = vmatprep.subr.mxu0 0.0
        %763 = vmatpush1.msra.mxu0 %v573
        %764 = vmatprep.subr.mxu0 0.0
        %765 = vmatpush1.msra.mxu0 %v574
        %766 = vmatprep.subr.mxu0 0.0
        %767 = vmatpush1.msra.mxu0 %v575
        %768 = vmatprep.subr.mxu0 0.0
        %769 = vmatpush1.msra.mxu0 %v576
        %770 = vmatprep.subr.mxu0 0.0
        %771 = vmatpush1.msra.mxu0 %v577
        %772 = vmatprep.subr.mxu0 0.0
        %773 = vmatpush1.msra.mxu0 %v578
        %774 = vmatprep.subr.mxu0 0.0
        %775 = vmatpush1.msra.mxu0 %v579
        %776 = vmatprep.subr.mxu0 0.0
        %777 = vmatpush1.msra.mxu0 %v580
        %778 = vmatprep.subr.mxu0 0.0
        %779 = vmatpush1.msra.mxu0 0.0
        %780 = vmatprep.subr.mxu0 0.0
        %781 = vmatpush1.msra.mxu0 0.0
        %782 = vmatprep.subr.mxu0 0.0
        %783 = vmatpush1.msra.mxu0 0.0
        %784 = vmatprep.subr.mxu0 0.0
        %785 = vmatpush1.msra.mxu0 0.0
        %786 = vmatprep.subr.mxu0 0.0
        %787 = vmatpush1.msra.mxu0 0.0
        %788 = vmatprep.subr.mxu0 0.0
        %789 = vmatpush1.msra.mxu0 0.0
        %790 = vmatprep.subr.mxu0 0.0
        %791 = vmatpush1.msra.mxu0 0.0
        %792 = vmatprep.subr.mxu0 0.0
        %793 = vmatpush1.msra.mxu0 0.0
        %794 = vmatprep.subr.mxu0 0.0
        %795 = vmatpush1.msra.mxu0 0.0
        %796 = vmatprep.subr.mxu0 0.0
        %797 = vmatpush1.msra.mxu0 0.0
        %798 = vmatprep.subr.mxu0 0.0
        %799 = vmatpush1.msra.mxu0 0.0
        %800 = vmatprep.subr.mxu0 0.0
        %801 = vmatpush1.msra.mxu0 0.0
        %802 = vmatprep.subr.mxu0 0.0
        %803 = vmatpush1.msra.mxu0 0.0
        %804 = vmatprep.subr.mxu0 0.0
        %805 = vmatpush1.msra.mxu0 0.0
        %806 = vmatprep.subr.mxu0 0.0
        %807 = vmatpush1.msra.mxu0 0.0
        %808 = vmatprep.subr.mxu0 0.0
        %809 = vmatpush1.msra.mxu0 0.0
        %810 = vmatprep.subr.mxu0 0.0
        %811 = vmatpush1.msra.mxu0 0.0
        %812 = vmatprep.subr.mxu0 0.0
        %813 = vmatpush1.msra.mxu0 0.0
        %814 = vmatprep.subr.mxu0 0.0
        %815 = vmatpush1.msra.mxu0 0.0
        %816 = vmatprep.subr.mxu0 0.0
        %817 = vmatpush1.msra.mxu0 0.0
        %818 = vmatprep.subr.mxu0 0.0
        %819 = vmatpush1.msra.mxu0 0.0
        %820 = vmatprep.subr.mxu0 0.0
        %821 = vmatpush1.msra.mxu0 0.0
        %822 = vmatprep.subr.mxu0 0.0
        %823 = vmatpush1.msra.mxu0 0.0
        %824 = vmatprep.subr.mxu0 0.0
        %825 = vmatpush1.msra.mxu0 0.0
        %826 = vmatprep.mubr.f32.mxu0 0.0
        %827 = vmatmul.mubr.f32.gmra.mrb[0].mxu0 %v757
        %v828 = vpop.f32.mrb[0].mxu0
        %v829 = vadd.f32 %v748, %v828
        %v830 = vpop.f32.mrb[0].mxu0
        %831 = vmatprep.mubr.f32.mxu0 0.0
        %832 = vmatmul.mubr.f32.gmra.mrb[0].mxu0 %v760
        %v833 = vpop.f32.mrb[0].mxu0
        %v834 = vadd.f32 %v753, %v833
        %v835 = vpop.f32.mrb[0].mxu0
        %836 = vdwg.mxu0
        %s837 = scalar_lea.vmem %s1, 32
        %v838 = vld [vmem:[%s837] sm:$0xff]
        %v839 = vld [vmem:[%s837 + $0x8] sm:$0xff]
        %v841 = vsel %vm491, %v838, 0
        %v844 = vsel %vm491, %v839, 0
        %846 = vmatprep.subr.mxu0 0.0
        %847 = vmatpush1.msra.mxu0 %v487
        %848 = vmatprep.subr.mxu0 0.0
        %849 = vmatpush1.msra.mxu0 %v488
        %850 = vmatprep.subr.mxu0 0.0
        %851 = vmatpush1.msra.mxu0 0.0
        %852 = vmatprep.subr.mxu0 0.0
        %853 = vmatpush1.msra.mxu0 0.0
        %854 = vmatprep.subr.mxu0 0.0
        %855 = vmatpush1.msra.mxu0 0.0
        %856 = vmatprep.subr.mxu0 0.0
        %857 = vmatpush1.msra.mxu0 0.0
        %858 = vmatprep.subr.mxu0 0.0
        %859 = vmatpush1.msra.mxu0 0.0
        %860 = vmatprep.subr.mxu0 0.0
        %861 = vmatpush1.msra.mxu0 0.0
        %862 = vmatprep.subr.mxu0 0.0
        %863 = vmatpush1.msra.mxu0 0.0
        %864 = vmatprep.subr.mxu0 0.0
        %865 = vmatpush1.msra.mxu0 0.0
        %866 = vmatprep.subr.mxu0 0.0
        %867 = vmatpush1.msra.mxu0 0.0
        %868 = vmatprep.subr.mxu0 0.0
        %869 = vmatpush1.msra.mxu0 0.0
        %870 = vmatprep.subr.mxu0 0.0
        %871 = vmatpush1.msra.mxu0 0.0
        %872 = vmatprep.subr.mxu0 0.0
        %873 = vmatpush1.msra.mxu0 0.0
        %874 = vmatprep.subr.mxu0 0.0
        %875 = vmatpush1.msra.mxu0 0.0
        %876 = vmatprep.subr.mxu0 0.0
        %877 = vmatpush1.msra.mxu0 0.0
        %878 = vmatprep.subr.mxu0 0.0
        %879 = vmatpush1.msra.mxu0 0.0
        %880 = vmatprep.subr.mxu0 0.0
        %881 = vmatpush1.msra.mxu0 0.0
        %882 = vmatprep.subr.mxu0 0.0
        %883 = vmatpush1.msra.mxu0 0.0
        %884 = vmatprep.subr.mxu0 0.0
        %885 = vmatpush1.msra.mxu0 0.0
        %886 = vmatprep.subr.mxu0 0.0
        %887 = vmatpush1.msra.mxu0 0.0
        %888 = vmatprep.subr.mxu0 0.0
        %889 = vmatpush1.msra.mxu0 0.0
        %890 = vmatprep.subr.mxu0 0.0
        %891 = vmatpush1.msra.mxu0 0.0
        %892 = vmatprep.subr.mxu0 0.0
        %893 = vmatpush1.msra.mxu0 0.0
        %894 = vmatprep.subr.mxu0 0.0
        %895 = vmatpush1.msra.mxu0 0.0
        %896 = vmatprep.subr.mxu0 0.0
        %897 = vmatpush1.msra.mxu0 0.0
        %898 = vmatprep.subr.mxu0 0.0
        %899 = vmatpush1.msra.mxu0 0.0
        %900 = vmatprep.subr.mxu0 0.0
        %901 = vmatpush1.msra.mxu0 0.0
        %902 = vmatprep.subr.mxu0 0.0
        %903 = vmatpush1.msra.mxu0 0.0
        %904 = vmatprep.subr.mxu0 0.0
        %905 = vmatpush1.msra.mxu0 0.0
        %906 = vmatprep.subr.mxu0 0.0
        %907 = vmatpush1.msra.mxu0 0.0
        %908 = vmatprep.subr.mxu0 0.0
        %909 = vmatpush1.msra.mxu0 0.0
        %910 = vmatprep.mubr.f32.mxu0 0.0
        %911 = vmatmul.mubr.f32.gmra.mrb[0].mxu0 %v841
        %v912 = vpop.f32.mrb[0].mxu0
        %v913 = vadd.f32 0.0, %v912
        %v914 = vpop.f32.mrb[0].mxu0
        %915 = vmatprep.mubr.f32.mxu0 0.0
        %916 = vmatmul.mubr.f32.gmra.mrb[0].mxu0 %v844
        %v917 = vpop.f32.mrb[0].mxu0
        %v918 = vadd.f32 0.0, %v917
        %v919 = vpop.f32.mrb[0].mxu0
        %920 = vdwg.mxu0
        %s921 = scalar_lea.vmem %s2, 128
        %v922 = vld [vmem:[%s921] sm:$0xff]
        %v923 = vld [vmem:[%s921 + $0x8] sm:$0xff]
        %v924 = vld [vmem:[%s921 + $0x10] sm:$0xff]
        %v925 = vld [vmem:[%s921 + $0x18] sm:$0xff]
        %v926 = vld [vmem:[%s921 + $0x20] sm:$0xff]
        %v927 = vld [vmem:[%s921 + $0x28] sm:$0xff]
        %v928 = vld [vmem:[%s921 + $0x30] sm:$0xff]
        %v929 = vld [vmem:[%s921 + $0x38] sm:$0xff]
        %v931 = vsel %vm674, %v913, 0
        %v934 = vsel %vm674, %v918, 0
        %936 = vmatprep.subr.mxu0 0.0
        %937 = vmatpush1.msra.mxu0 %v922
        %938 = vmatprep.subr.mxu0 0.0
        %939 = vmatpush1.msra.mxu0 %v923
        %940 = vmatprep.subr.mxu0 0.0
        %941 = vmatpush1.msra.mxu0 %v924
        %942 = vmatprep.subr.mxu0 0.0
        %943 = vmatpush1.msra.mxu0 %v925
        %944 = vmatprep.subr.mxu0 0.0
        %945 = vmatpush1.msra.mxu0 %v926
        %946 = vmatprep.subr.mxu0 0.0
        %947 = vmatpush1.msra.mxu0 %v927
        %948 = vmatprep.subr.mxu0 0.0
        %949 = vmatpush1.msra.mxu0 %v928
        %950 = vmatprep.subr.mxu0 0.0
        %951 = vmatpush1.msra.mxu0 %v929
        %952 = vmatprep.subr.mxu0 0.0
        %953 = vmatpush1.msra.mxu0 0.0
        %954 = vmatprep.subr.mxu0 0.0
        %955 = vmatpush1.msra.mxu0 0.0
        %956 = vmatprep.subr.mxu0 0.0
        %957 = vmatpush1.msra.mxu0 0.0
        %958 = vmatprep.subr.mxu0 0.0
        %959 = vmatpush1.msra.mxu0 0.0
        %960 = vmatprep.subr.mxu0 0.0
        %961 = vmatpush1.msra.mxu0 0.0
        %962 = vmatprep.subr.mxu0 0.0
        %963 = vmatpush1.msra.mxu0 0.0
        %964 = vmatprep.subr.mxu0 0.0
        %965 = vmatpush1.msra.mxu0 0.0
        %966 = vmatprep.subr.mxu0 0.0
        %967 = vmatpush1.msra.mxu0 0.0
        %968 = vmatprep.subr.mxu0 0.0
        %969 = vmatpush1.msra.mxu0 0.0
        %970 = vmatprep.subr.mxu0 0.0
        %971 = vmatpush1.msra.mxu0 0.0
        %972 = vmatprep.subr.mxu0 0.0
        %973 = vmatpush1.msra.mxu0 0.0
        %974 = vmatprep.subr.mxu0 0.0
        %975 = vmatpush1.msra.mxu0 0.0
        %976 = vmatprep.subr.mxu0 0.0
        %977 = vmatpush1.msra.mxu0 0.0
        %978 = vmatprep.subr.mxu0 0.0
        %979 = vmatpush1.msra.mxu0 0.0
        %980 = vmatprep.subr.mxu0 0.0
        %981 = vmatpush1.msra.mxu0 0.0
        %982 = vmatprep.subr.mxu0 0.0
        %983 = vmatpush1.msra.mxu0 0.0
        %984 = vmatprep.subr.mxu0 0.0
        %985 = vmatpush1.msra.mxu0 0.0
        %986 = vmatprep.subr.mxu0 0.0
        %987 = vmatpush1.msra.mxu0 0.0
        %988 = vmatprep.subr.mxu0 0.0
        %989 = vmatpush1.msra.mxu0 0.0
        %990 = vmatprep.subr.mxu0 0.0
        %991 = vmatpush1.msra.mxu0 0.0
        %992 = vmatprep.subr.mxu0 0.0
        %993 = vmatpush1.msra.mxu0 0.0
        %994 = vmatprep.subr.mxu0 0.0
        %995 = vmatpush1.msra.mxu0 0.0
        %996 = vmatprep.subr.mxu0 0.0
        %997 = vmatpush1.msra.mxu0 0.0
        %998 = vmatprep.subr.mxu0 0.0
        %999 = vmatpush1.msra.mxu0 0.0
        %1000 = vmatprep.mubr.f32.mxu0 0.0
        %1001 = vmatmul.mubr.f32.gmra.mrb[0].mxu0 %v931
        %v1002 = vpop.f32.mrb[0].mxu0
        %v1003 = vadd.f32 0.0, %v1002
        %v1004 = vpop.f32.mrb[0].mxu0
        %1005 = vmatprep.mubr.f32.mxu0 0.0
        %1006 = vmatmul.mubr.f32.gmra.mrb[0].mxu0 %v934
        %v1007 = vpop.f32.mrb[0].mxu0
        %v1008 = vadd.f32 0.0, %v1007
        %v1009 = vpop.f32.mrb[0].mxu0
        %1010 = vdwg.mxu0
        %v1011 = vadd.f32 %v829, %v1003
        %v1012 = vadd.f32 %v834, %v1008
        %v1013 = vld [vmem:[%s3] sm:$0x1]
        %v1015 = vlaneseq
        %v1016 = vshrl.u32 %v1015, 7
        %v1017 = vsub.s32 0, %v1016
        %v1018 = vrot.slane %v1013, %v1017
        %v1020 = vadd.f32 %v1011, %v1018
        %v1021 = vadd.f32 %v1012, %v1018
        %v1022 = vmax.f32 %v1020, 0.0
        %v1023 = vmax.f32 %v1021, 0.0
        %v1024 = vld [vmem:[%s4] sm:$0xff]
        %v1025 = vld [vmem:[%s4 + $0x8] sm:$0xff]
        %v1026 = vld [vmem:[%s4 + $0x10] sm:$0xff]
        %v1027 = vld [vmem:[%s4 + $0x18] sm:$0xff]
        %v1028 = vld [vmem:[%s4 + $0x20] sm:$0xff]
        %v1029 = vld [vmem:[%s4 + $0x28] sm:$0xff]
        %v1030 = vld [vmem:[%s4 + $0x30] sm:$0xff]
        %v1031 = vld [vmem:[%s4 + $0x38] sm:$0xff]
        %v1032 = vld [vmem:[%s4 + $0x40] sm:$0xff]
        %v1033 = vld [vmem:[%s4 + $0x48] sm:$0xff]
        %v1034 = vld [vmem:[%s4 + $0x50] sm:$0xff]
        %v1035 = vld [vmem:[%s4 + $0x58] sm:$0xff]
        %v1036 = vld [vmem:[%s4 + $0x60] sm:$0xff]
        %v1037 = vld [vmem:[%s4 + $0x68] sm:$0xff]
        %v1038 = vld [vmem:[%s4 + $0x70] sm:$0xff]
        %v1039 = vld [vmem:[%s4 + $0x78] sm:$0xff]
        %1040 = vmatprep.subr.mxu0 0.0
        %1041 = vmatpush1.msra.mxu0 %v1024
        %1042 = vmatprep.subr.mxu0 0.0
        %1043 = vmatpush1.msra.mxu0 %v1025
        %1044 = vmatprep.subr.mxu0 0.0
        %1045 = vmatpush1.msra.mxu0 %v1026
        %1046 = vmatprep.subr.mxu0 0.0
        %1047 = vmatpush1.msra.mxu0 %v1027
        %1048 = vmatprep.subr.mxu0 0.0
        %1049 = vmatpush1.msra.mxu0 %v1028
        %1050 = vmatprep.subr.mxu0 0.0
        %1051 = vmatpush1.msra.mxu0 %v1029
        %1052 = vmatprep.subr.mxu0 0.0
        %1053 = vmatpush1.msra.mxu0 %v1030
        %1054 = vmatprep.subr.mxu0 0.0
        %1055 = vmatpush1.msra.mxu0 %v1031
        %1056 = vmatprep.subr.mxu0 0.0
        %1057 = vmatpush1.msra.mxu0 %v1032
        %1058 = vmatprep.subr.mxu0 0.0
        %1059 = vmatpush1.msra.mxu0 %v1033
        %1060 = vmatprep.subr.mxu0 0.0
        %1061 = vmatpush1.msra.mxu0 %v1034
        %1062 = vmatprep.subr.mxu0 0.0
        %1063 = vmatpush1.msra.mxu0 %v1035
        %1064 = vmatprep.subr.mxu0 0.0
        %1065 = vmatpush1.msra.mxu0 %v1036
        %1066 = vmatprep.subr.mxu0 0.0
        %1067 = vmatpush1.msra.mxu0 %v1037
        %1068 = vmatprep.subr.mxu0 0.0
        %1069 = vmatpush1.msra.mxu0 %v1038
        %1070 = vmatprep.subr.mxu0 0.0
        %1071 = vmatpush1.msra.mxu0 %v1039
        %1072 = vmatprep.subr.mxu0 0.0
        %1073 = vmatpush1.msra.mxu0 0.0
        %1074 = vmatprep.subr.mxu0 0.0
        %1075 = vmatpush1.msra.mxu0 0.0
        %1076 = vmatprep.subr.mxu0 0.0
        %1077 = vmatpush1.msra.mxu0 0.0
        %1078 = vmatprep.subr.mxu0 0.0
        %1079 = vmatpush1.msra.mxu0 0.0
        %1080 = vmatprep.subr.mxu0 0.0
        %1081 = vmatpush1.msra.mxu0 0.0
        %1082 = vmatprep.subr.mxu0 0.0
        %1083 = vmatpush1.msra.mxu0 0.0
        %1084 = vmatprep.subr.mxu0 0.0
        %1085 = vmatpush1.msra.mxu0 0.0
        %1086 = vmatprep.subr.mxu0 0.0
        %1087 = vmatpush1.msra.mxu0 0.0
        %1088 = vmatprep.subr.mxu0 0.0
        %1089 = vmatpush1.msra.mxu0 0.0
        %1090 = vmatprep.subr.mxu0 0.0
        %1091 = vmatpush1.msra.mxu0 0.0
        %1092 = vmatprep.subr.mxu0 0.0
        %1093 = vmatpush1.msra.mxu0 0.0
        %1094 = vmatprep.subr.mxu0 0.0
        %1095 = vmatpush1.msra.mxu0 0.0
        %1096 = vmatprep.subr.mxu0 0.0
        %1097 = vmatpush1.msra.mxu0 0.0
        %1098 = vmatprep.subr.mxu0 0.0
        %1099 = vmatpush1.msra.mxu0 0.0
        %1100 = vmatprep.subr.mxu0 0.0
        %1101 = vmatpush1.msra.mxu0 0.0
        %1102 = vmatprep.subr.mxu0 0.0
        %1103 = vmatpush1.msra.mxu0 0.0
        %1104 = vmatprep.mubr.f32.mxu0 0.0
        %1105 = vmatmul.mubr.f32.gmra.mrb[0].mxu0 %v1022
        %v1106 = vpop.f32.mrb[0].mxu0
        %v1107 = vadd.f32 0.0, %v1106
        %v1108 = vpop.f32.mrb[0].mxu0
        %1109 = vmatprep.mubr.f32.mxu0 0.0
        %1110 = vmatmul.mubr.f32.gmra.mrb[0].mxu0 %v1023
        %v1111 = vpop.f32.mrb[0].mxu0
        %v1112 = vadd.f32 0.0, %v1111
        %v1113 = vpop.f32.mrb[0].mxu0
        %1114 = vdwg.mxu0
        %s1115 = scalar_lea.vmem %s4, 128
        %v1116 = vld [vmem:[%s1115] sm:$0xff]
        %v1117 = vld [vmem:[%s1115 + $0x8] sm:$0xff]
        %v1118 = vld [vmem:[%s1115 + $0x10] sm:$0xff]
        %v1119 = vld [vmem:[%s1115 + $0x18] sm:$0xff]
        %v1120 = vld [vmem:[%s1115 + $0x20] sm:$0xff]
        %v1121 = vld [vmem:[%s1115 + $0x28] sm:$0xff]
        %v1122 = vld [vmem:[%s1115 + $0x30] sm:$0xff]
        %v1123 = vld [vmem:[%s1115 + $0x38] sm:$0xff]
        %v1124 = vld [vmem:[%s1115 + $0x40] sm:$0xff]
        %v1125 = vld [vmem:[%s1115 + $0x48] sm:$0xff]
        %v1126 = vld [vmem:[%s1115 + $0x50] sm:$0xff]
        %v1127 = vld [vmem:[%s1115 + $0x58] sm:$0xff]
        %v1128 = vld [vmem:[%s1115 + $0x60] sm:$0xff]
        %v1129 = vld [vmem:[%s1115 + $0x68] sm:$0xff]
        %v1130 = vld [vmem:[%s1115 + $0x70] sm:$0xff]
        %v1131 = vld [vmem:[%s1115 + $0x78] sm:$0xff]
        %1132 = vmatprep.subr.mxu0 0.0
        %1133 = vmatpush1.msra.mxu0 %v1116
        %1134 = vmatprep.subr.mxu0 0.0
        %1135 = vmatpush1.msra.mxu0 %v1117
        %1136 = vmatprep.subr.mxu0 0.0
        %1137 = vmatpush1.msra.mxu0 %v1118
        %1138 = vmatprep.subr.mxu0 0.0
        %1139 = vmatpush1.msra.mxu0 %v1119
        %1140 = vmatprep.subr.mxu0 0.0
        %1141 = vmatpush1.msra.mxu0 %v1120
        %1142 = vmatprep.subr.mxu0 0.0
        %1143 = vmatpush1.msra.mxu0 %v1121
        %1144 = vmatprep.subr.mxu0 0.0
        %1145 = vmatpush1.msra.mxu0 %v1122
        %1146 = vmatprep.subr.mxu0 0.0
        %1147 = vmatpush1.msra.mxu0 %v1123
        %1148 = vmatprep.subr.mxu0 0.0
        %1149 = vmatpush1.msra.mxu0 %v1124
        %1150 = vmatprep.subr.mxu0 0.0
        %1151 = vmatpush1.msra.mxu0 %v1125
        %1152 = vmatprep.subr.mxu0 0.0
        %1153 = vmatpush1.msra.mxu0 %v1126
        %1154 = vmatprep.subr.mxu0 0.0
        %1155 = vmatpush1.msra.mxu0 %v1127
        %1156 = vmatprep.subr.mxu0 0.0
        %1157 = vmatpush1.msra.mxu0 %v1128
        %1158 = vmatprep.subr.mxu0 0.0
        %1159 = vmatpush1.msra.mxu0 %v1129
        %1160 = vmatprep.subr.mxu0 0.0
        %1161 = vmatpush1.msra.mxu0 %v1130
        %1162 = vmatprep.subr.mxu0 0.0
        %1163 = vmatpush1.msra.mxu0 %v1131
        %1164 = vmatprep.subr.mxu0 0.0
        %1165 = vmatpush1.msra.mxu0 0.0
        %1166 = vmatprep.subr.mxu0 0.0
        %1167 = vmatpush1.msra.mxu0 0.0
        %1168 = vmatprep.subr.mxu0 0.0
        %1169 = vmatpush1.msra.mxu0 0.0
        %1170 = vmatprep.subr.mxu0 0.0
        %1171 = vmatpush1.msra.mxu0 0.0
        %1172 = vmatprep.subr.mxu0 0.0
        %1173 = vmatpush1.msra.mxu0 0.0
        %1174 = vmatprep.subr.mxu0 0.0
        %1175 = vmatpush1.msra.mxu0 0.0
        %1176 = vmatprep.subr.mxu0 0.0
        %1177 = vmatpush1.msra.mxu0 0.0
        %1178 = vmatprep.subr.mxu0 0.0
        %1179 = vmatpush1.msra.mxu0 0.0
        %1180 = vmatprep.subr.mxu0 0.0
        %1181 = vmatpush1.msra.mxu0 0.0
        %1182 = vmatprep.subr.mxu0 0.0
        %1183 = vmatpush1.msra.mxu0 0.0
        %1184 = vmatprep.subr.mxu0 0.0
        %1185 = vmatpush1.msra.mxu0 0.0
        %1186 = vmatprep.subr.mxu0 0.0
        %1187 = vmatpush1.msra.mxu0 0.0
        %1188 = vmatprep.subr.mxu0 0.0
        %1189 = vmatpush1.msra.mxu0 0.0
        %1190 = vmatprep.subr.mxu0 0.0
        %1191 = vmatpush1.msra.mxu0 0.0
        %1192 = vmatprep.subr.mxu0 0.0
        %1193 = vmatpush1.msra.mxu0 0.0
        %1194 = vmatprep.subr.mxu0 0.0
        %1195 = vmatpush1.msra.mxu0 0.0
        %1196 = vmatprep.mubr.f32.mxu0 0.0
        %1197 = vmatmul.mubr.f32.gmra.mrb[0].mxu0 %v1022
        %v1198 = vpop.f32.mrb[0].mxu0
        %v1199 = vadd.f32 0.0, %v1198
        %v1200 = vpop.f32.mrb[0].mxu0
        %1201 = vmatprep.mubr.f32.mxu0 0.0
        %1202 = vmatmul.mubr.f32.gmra.mrb[0].mxu0 %v1023
        %v1203 = vpop.f32.mrb[0].mxu0
        %v1204 = vadd.f32 0.0, %v1203
        %v1205 = vpop.f32.mrb[0].mxu0
        %1206 = vdwg.mxu0
        %v1207 = vmax.f32 %v1107, %v1199
        %v1208 = vmax.f32 %v1112, %v1204
        %v1209 = vld [vmem:[#allocation5] sm:$0xff]
        %v1211 = vsel %vm491, %v1209, 0
        %1213 = vmatprep.subr.mxu0 0.0
        %1214 = vmatpush1.msra.mxu0 %v1207
        %1215 = vmatprep.subr.mxu0 0.0
        %1216 = vmatpush1.msra.mxu0 %v1208
        %1217 = vmatprep.subr.mxu0 0.0
        %1218 = vmatpush1.msra.mxu0 0.0
        %1219 = vmatprep.subr.mxu0 0.0
        %1220 = vmatpush1.msra.mxu0 0.0
        %1221 = vmatprep.subr.mxu0 0.0
        %1222 = vmatpush1.msra.mxu0 0.0
        %1223 = vmatprep.subr.mxu0 0.0
        %1224 = vmatpush1.msra.mxu0 0.0
        %1225 = vmatprep.subr.mxu0 0.0
        %1226 = vmatpush1.msra.mxu0 0.0
        %1227 = vmatprep.subr.mxu0 0.0
        %1228 = vmatpush1.msra.mxu0 0.0
        %1229 = vmatprep.subr.mxu0 0.0
        %1230 = vmatpush1.msra.mxu0 0.0
        %1231 = vmatprep.subr.mxu0 0.0
        %1232 = vmatpush1.msra.mxu0 0.0
        %1233 = vmatprep.subr.mxu0 0.0
        %1234 = vmatpush1.msra.mxu0 0.0
        %1235 = vmatprep.subr.mxu0 0.0
        %1236 = vmatpush1.msra.mxu0 0.0
        %1237 = vmatprep.subr.mxu0 0.0
        %1238 = vmatpush1.msra.mxu0 0.0
        %1239 = vmatprep.subr.mxu0 0.0
        %1240 = vmatpush1.msra.mxu0 0.0
        %1241 = vmatprep.subr.mxu0 0.0
        %1242 = vmatpush1.msra.mxu0 0.0
        %1243 = vmatprep.subr.mxu0 0.0
        %1244 = vmatpush1.msra.mxu0 0.0
        %1245 = vmatprep.subr.mxu0 0.0
        %1246 = vmatpush1.msra.mxu0 0.0
        %1247 = vmatprep.subr.mxu0 0.0
        %1248 = vmatpush1.msra.mxu0 0.0
        %1249 = vmatprep.subr.mxu0 0.0
        %1250 = vmatpush1.msra.mxu0 0.0
        %1251 = vmatprep.subr.mxu0 0.0
        %1252 = vmatpush1.msra.mxu0 0.0
        %1253 = vmatprep.subr.mxu0 0.0
        %1254 = vmatpush1.msra.mxu0 0.0
        %1255 = vmatprep.subr.mxu0 0.0
        %1256 = vmatpush1.msra.mxu0 0.0
        %1257 = vmatprep.subr.mxu0 0.0
        %1258 = vmatpush1.msra.mxu0 0.0
        %1259 = vmatprep.subr.mxu0 0.0
        %1260 = vmatpush1.msra.mxu0 0.0
        %1261 = vmatprep.subr.mxu0 0.0
        %1262 = vmatpush1.msra.mxu0 0.0
        %1263 = vmatprep.subr.mxu0 0.0
        %1264 = vmatpush1.msra.mxu0 0.0
        %1265 = vmatprep.subr.mxu0 0.0
        %1266 = vmatpush1.msra.mxu0 0.0
        %1267 = vmatprep.subr.mxu0 0.0
        %1268 = vmatpush1.msra.mxu0 0.0
        %1269 = vmatprep.subr.mxu0 0.0
        %1270 = vmatpush1.msra.mxu0 0.0
        %1271 = vmatprep.subr.mxu0 0.0
        %1272 = vmatpush1.msra.mxu0 0.0
        %1273 = vmatprep.subr.mxu0 0.0
        %1274 = vmatpush1.msra.mxu0 0.0
        %1275 = vmatprep.subr.mxu0 0.0
        %1276 = vmatpush1.msra.mxu0 0.0
        %1277 = vmatprep.mubr.f32.mxu0 0.0
        %1278 = vmatmul.mubr.f32.gmra.mrb[0].mxu0 %v1211
        %v1279 = vpop.f32.mrb[0].mxu0
        %v1280 = vadd.f32 0.0, %v1279
        %v1281 = vpop.f32.mrb[0].mxu0
        %1282 = vdwg.mxu0
        %s1283 = scalar_lea.vmem [#allocation5], 8
        %v1284 = vld [vmem:[%s1283] sm:$0xff]
        %v1286 = vsel %vm491, %v1284, 0
        %1288 = vmatprep.subr.mxu0 0.0
        %1289 = vmatpush1.msra.mxu0 %v1207
        %1290 = vmatprep.subr.mxu0 0.0
        %1291 = vmatpush1.msra.mxu0 %v1208
        %1292 = vmatprep.subr.mxu0 0.0
        %1293 = vmatpush1.msra.mxu0 0.0
        %1294 = vmatprep.subr.mxu0 0.0
        %1295 = vmatpush1.msra.mxu0 0.0
        %1296 = vmatprep.subr.mxu0 0.0
        %1297 = vmatpush1.msra.mxu0 0.0
        %1298 = vmatprep.subr.mxu0 0.0
        %1299 = vmatpush1.msra.mxu0 0.0
        %1300 = vmatprep.subr.mxu0 0.0
        %1301 = vmatpush1.msra.mxu0 0.0
        %1302 = vmatprep.subr.mxu0 0.0
        %1303 = vmatpush1.msra.mxu0 0.0
        %1304 = vmatprep.subr.mxu0 0.0
        %1305 = vmatpush1.msra.mxu0 0.0
        %1306 = vmatprep.subr.mxu0 0.0
        %1307 = vmatpush1.msra.mxu0 0.0
        %1308 = vmatprep.subr.mxu0 0.0
        %1309 = vmatpush1.msra.mxu0 0.0
        %1310 = vmatprep.subr.mxu0 0.0
        %1311 = vmatpush1.msra.mxu0 0.0
        %1312 = vmatprep.subr.mxu0 0.0
        %1313 = vmatpush1.msra.mxu0 0.0
        %1314 = vmatprep.subr.mxu0 0.0
        %1315 = vmatpush1.msra.mxu0 0.0
        %1316 = vmatprep.subr.mxu0 0.0
        %1317 = vmatpush1.msra.mxu0 0.0
        %1318 = vmatprep.subr.mxu0 0.0
        %1319 = vmatpush1.msra.mxu0 0.0
        %1320 = vmatprep.subr.mxu0 0.0
        %1321 = vmatpush1.msra.mxu0 0.0
        %1322 = vmatprep.subr.mxu0 0.0
        %1323 = vmatpush1.msra.mxu0 0.0
        %1324 = vmatprep.subr.mxu0 0.0
        %1325 = vmatpush1.msra.mxu0 0.0
        %1326 = vmatprep.subr.mxu0 0.0
        %1327 = vmatpush1.msra.mxu0 0.0
        %1328 = vmatprep.subr.mxu0 0.0
        %1329 = vmatpush1.msra.mxu0 0.0
        %1330 = vmatprep.subr.mxu0 0.0
        %1331 = vmatpush1.msra.mxu0 0.0
        %1332 = vmatprep.subr.mxu0 0.0
        %1333 = vmatpush1.msra.mxu0 0.0
        %1334 = vmatprep.subr.mxu0 0.0
        %1335 = vmatpush1.msra.mxu0 0.0
        %1336 = vmatprep.subr.mxu0 0.0
        %1337 = vmatpush1.msra.mxu0 0.0
        %1338 = vmatprep.subr.mxu0 0.0
        %1339 = vmatpush1.msra.mxu0 0.0
        %1340 = vmatprep.subr.mxu0 0.0
        %1341 = vmatpush1.msra.mxu0 0.0
        %1342 = vmatprep.subr.mxu0 0.0
        %1343 = vmatpush1.msra.mxu0 0.0
        %1344 = vmatprep.subr.mxu0 0.0
        %1345 = vmatpush1.msra.mxu0 0.0
        %1346 = vmatprep.subr.mxu0 0.0
        %1347 = vmatpush1.msra.mxu0 0.0
        %1348 = vmatprep.subr.mxu0 0.0
        %1349 = vmatpush1.msra.mxu0 0.0
        %1350 = vmatprep.subr.mxu0 0.0
        %1351 = vmatpush1.msra.mxu0 0.0
        %1352 = vmatprep.mubr.f32.mxu0 0.0
        %1353 = vmatmul.mubr.f32.gmra.mrb[0].mxu0 %v1286
        %v1354 = vpop.f32.mrb[0].mxu0
        %v1355 = vadd.f32 0.0, %v1354
        %v1356 = vpop.f32.mrb[0].mxu0
        %1357 = vdwg.mxu0
        %v1358 = vmax.f32 %v1280, %v1355
        %v1359 = vld [vmem:[%s6] sm:$0xff]
        %vm1360 = vcmask 64512
        %v1362 = vsel %vm1360, %v1359, 0
        %1364 = vmatprep.subr.mxu0 0.0
        %1365 = vmatpush1.msra.mxu0 %v1358
        %1366 = vmatprep.subr.mxu0 0.0
        %1367 = vmatpush1.msra.mxu0 0.0
        %1368 = vmatprep.subr.mxu0 0.0
        %1369 = vmatpush1.msra.mxu0 0.0
        %1370 = vmatprep.subr.mxu0 0.0
        %1371 = vmatpush1.msra.mxu0 0.0
        %1372 = vmatprep.subr.mxu0 0.0
        %1373 = vmatpush1.msra.mxu0 0.0
        %1374 = vmatprep.subr.mxu0 0.0
        %1375 = vmatpush1.msra.mxu0 0.0
        %1376 = vmatprep.subr.mxu0 0.0
        %1377 = vmatpush1.msra.mxu0 0.0
        %1378 = vmatprep.subr.mxu0 0.0
        %1379 = vmatpush1.msra.mxu0 0.0
        %1380 = vmatprep.subr.mxu0 0.0
        %1381 = vmatpush1.msra.mxu0 0.0
        %1382 = vmatprep.subr.mxu0 0.0
        %1383 = vmatpush1.msra.mxu0 0.0
        %1384 = vmatprep.subr.mxu0 0.0
        %1385 = vmatpush1.msra.mxu0 0.0
        %1386 = vmatprep.subr.mxu0 0.0
        %1387 = vmatpush1.msra.mxu0 0.0
        %1388 = vmatprep.subr.mxu0 0.0
        %1389 = vmatpush1.msra.mxu0 0.0
        %1390 = vmatprep.subr.mxu0 0.0
        %1391 = vmatpush1.msra.mxu0 0.0
        %1392 = vmatprep.subr.mxu0 0.0
        %1393 = vmatpush1.msra.mxu0 0.0
        %1394 = vmatprep.subr.mxu0 0.0
        %1395 = vmatpush1.msra.mxu0 0.0
        %1396 = vmatprep.subr.mxu0 0.0
        %1397 = vmatpush1.msra.mxu0 0.0
        %1398 = vmatprep.subr.mxu0 0.0
        %1399 = vmatpush1.msra.mxu0 0.0
        %1400 = vmatprep.subr.mxu0 0.0
        %1401 = vmatpush1.msra.mxu0 0.0
        %1402 = vmatprep.subr.mxu0 0.0
        %1403 = vmatpush1.msra.mxu0 0.0
        %1404 = vmatprep.subr.mxu0 0.0
        %1405 = vmatpush1.msra.mxu0 0.0
        %1406 = vmatprep.subr.mxu0 0.0
        %1407 = vmatpush1.msra.mxu0 0.0
        %1408 = vmatprep.subr.mxu0 0.0
        %1409 = vmatpush1.msra.mxu0 0.0
        %1410 = vmatprep.subr.mxu0 0.0
        %1411 = vmatpush1.msra.mxu0 0.0
        %1412 = vmatprep.subr.mxu0 0.0
        %1413 = vmatpush1.msra.mxu0 0.0
        %1414 = vmatprep.subr.mxu0 0.0
        %1415 = vmatpush1.msra.mxu0 0.0
        %1416 = vmatprep.subr.mxu0 0.0
        %1417 = vmatpush1.msra.mxu0 0.0
        %1418 = vmatprep.subr.mxu0 0.0
        %1419 = vmatpush1.msra.mxu0 0.0
        %1420 = vmatprep.subr.mxu0 0.0
        %1421 = vmatpush1.msra.mxu0 0.0
        %1422 = vmatprep.subr.mxu0 0.0
        %1423 = vmatpush1.msra.mxu0 0.0
        %1424 = vmatprep.subr.mxu0 0.0
        %1425 = vmatpush1.msra.mxu0 0.0
        %1426 = vmatprep.subr.mxu0 0.0
        %1427 = vmatpush1.msra.mxu0 0.0
        %1428 = vmatprep.mubr.f32.mxu0 0.0
        %1429 = vmatmul.mubr.f32.gmra.mrb[0].mxu0 %v1362
        %v1430 = vpop.f32.mrb[0].mxu0
        %v1431 = vadd.f32 0.0, %v1430
        %v1432 = vpop.f32.mrb[0].mxu0
        %1433 = vdwg.mxu0
        %v1434 = vld [vmem:[%s7] sm:$0xff]
        %v1435 = vld [vmem:[%s7 + $0x8] sm:$0xff]
        %v1436 = vld [vmem:[%s7 + $0x10] sm:$0xff]
        %v1437 = vld [vmem:[%s7 + $0x18] sm:$0xff]
        %v1438 = vld [vmem:[%s7 + $0x20] sm:$0xff]
        %v1439 = vld [vmem:[%s7 + $0x28] sm:$0xff]
        %v1440 = vld [vmem:[%s7 + $0x30] sm:$0xff]
        %v1441 = vld [vmem:[%s7 + $0x38] sm:$0xff]
        %s1442 = scalar_lea.vmem %s6, 8
        %v1443 = vld [vmem:[%s1442] sm:$0xff]
        %v1445 = vsel %vm1360, %v1443, 0
        %1447 = vmatprep.subr.mxu0 0.0
        %1448 = vmatpush1.msra.mxu0 %v1358
        %1449 = vmatprep.subr.mxu0 0.0
        %1450 = vmatpush1.msra.mxu0 0.0
        %1451 = vmatprep.subr.mxu0 0.0
        %1452 = vmatpush1.msra.mxu0 0.0
        %1453 = vmatprep.subr.mxu0 0.0
        %1454 = vmatpush1.msra.mxu0 0.0
        %1455 = vmatprep.subr.mxu0 0.0
        %1456 = vmatpush1.msra.mxu0 0.0
        %1457 = vmatprep.subr.mxu0 0.0
        %1458 = vmatpush1.msra.mxu0 0.0
        %1459 = vmatprep.subr.mxu0 0.0
        %1460 = vmatpush1.msra.mxu0 0.0
        %1461 = vmatprep.subr.mxu0 0.0
        %1462 = vmatpush1.msra.mxu0 0.0
        %1463 = vmatprep.subr.mxu0 0.0
        %1464 = vmatpush1.msra.mxu0 0.0
        %1465 = vmatprep.subr.mxu0 0.0
        %1466 = vmatpush1.msra.mxu0 0.0
        %1467 = vmatprep.subr.mxu0 0.0
        %1468 = vmatpush1.msra.mxu0 0.0
        %1469 = vmatprep.subr.mxu0 0.0
        %1470 = vmatpush1.msra.mxu0 0.0
        %1471 = vmatprep.subr.mxu0 0.0
        %1472 = vmatpush1.msra.mxu0 0.0
        %1473 = vmatprep.subr.mxu0 0.0
        %1474 = vmatpush1.msra.mxu0 0.0
        %1475 = vmatprep.subr.mxu0 0.0
        %1476 = vmatpush1.msra.mxu0 0.0
        %1477 = vmatprep.subr.mxu0 0.0
        %1478 = vmatpush1.msra.mxu0 0.0
        %1479 = vmatprep.subr.mxu0 0.0
        %1480 = vmatpush1.msra.mxu0 0.0
        %1481 = vmatprep.subr.mxu0 0.0
        %1482 = vmatpush1.msra.mxu0 0.0
        %1483 = vmatprep.subr.mxu0 0.0
        %1484 = vmatpush1.msra.mxu0 0.0
        %1485 = vmatprep.subr.mxu0 0.0
        %1486 = vmatpush1.msra.mxu0 0.0
        %1487 = vmatprep.subr.mxu0 0.0
        %1488 = vmatpush1.msra.mxu0 0.0
        %1489 = vmatprep.subr.mxu0 0.0
        %1490 = vmatpush1.msra.mxu0 0.0
        %1491 = vmatprep.subr.mxu0 0.0
        %1492 = vmatpush1.msra.mxu0 0.0
        %1493 = vmatprep.subr.mxu0 0.0
        %1494 = vmatpush1.msra.mxu0 0.0
        %1495 = vmatprep.subr.mxu0 0.0
        %1496 = vmatpush1.msra.mxu0 0.0
        %1497 = vmatprep.subr.mxu0 0.0
        %1498 = vmatpush1.msra.mxu0 0.0
        %1499 = vmatprep.subr.mxu0 0.0
        %1500 = vmatpush1.msra.mxu0 0.0
        %1501 = vmatprep.subr.mxu0 0.0
        %1502 = vmatpush1.msra.mxu0 0.0
        %1503 = vmatprep.subr.mxu0 0.0
        %1504 = vmatpush1.msra.mxu0 0.0
        %1505 = vmatprep.subr.mxu0 0.0
        %1506 = vmatpush1.msra.mxu0 0.0
        %1507 = vmatprep.subr.mxu0 0.0
        %1508 = vmatpush1.msra.mxu0 0.0
        %1509 = vmatprep.subr.mxu0 0.0
        %1510 = vmatpush1.msra.mxu0 0.0
        %1511 = vmatprep.mubr.f32.mxu0 0.0
        %1512 = vmatmul.mubr.f32.gmra.mrb[0].mxu0 %v1445
        %v1513 = vpop.f32.mrb[0].mxu0
        %v1514 = vadd.f32 0.0, %v1513
        %v1515 = vpop.f32.mrb[0].mxu0
        %1516 = vdwg.mxu0
        %s1517 = scalar_lea.vmem %s7, 64
        %v1518 = vld [vmem:[%s1517] sm:$0xff]
        %v1519 = vld [vmem:[%s1517 + $0x8] sm:$0xff]
        %v1520 = vld [vmem:[%s1517 + $0x10] sm:$0xff]
        %v1521 = vld [vmem:[%s1517 + $0x18] sm:$0xff]
        %v1522 = vld [vmem:[%s1517 + $0x20] sm:$0xff]
        %v1523 = vld [vmem:[%s1517 + $0x28] sm:$0xff]
        %v1524 = vld [vmem:[%s1517 + $0x30] sm:$0xff]
        %v1525 = vld [vmem:[%s1517 + $0x38] sm:$0xff]
        %v1527 = vsel %vm674, %v1514, 0
        %1529 = vmatprep.subr.mxu0 0.0
        %1530 = vmatpush1.msra.mxu0 %v1518
        %1531 = vmatprep.subr.mxu0 0.0
        %1532 = vmatpush1.msra.mxu0 %v1519
        %1533 = vmatprep.subr.mxu0 0.0
        %1534 = vmatpush1.msra.mxu0 %v1520
        %1535 = vmatprep.subr.mxu0 0.0
        %1536 = vmatpush1.msra.mxu0 %v1521
        %1537 = vmatprep.subr.mxu0 0.0
        %1538 = vmatpush1.msra.mxu0 %v1522
        %1539 = vmatprep.subr.mxu0 0.0
        %1540 = vmatpush1.msra.mxu0 %v1523
        %1541 = vmatprep.subr.mxu0 0.0
        %1542 = vmatpush1.msra.mxu0 %v1524
        %1543 = vmatprep.subr.mxu0 0.0
        %1544 = vmatpush1.msra.mxu0 %v1525
        %1545 = vmatprep.subr.mxu0 0.0
        %1546 = vmatpush1.msra.mxu0 0.0
        %1547 = vmatprep.subr.mxu0 0.0
        %1548 = vmatpush1.msra.mxu0 0.0
        %1549 = vmatprep.subr.mxu0 0.0
        %1550 = vmatpush1.msra.mxu0 0.0
        %1551 = vmatprep.subr.mxu0 0.0
        %1552 = vmatpush1.msra.mxu0 0.0
        %1553 = vmatprep.subr.mxu0 0.0
        %1554 = vmatpush1.msra.mxu0 0.0
        %1555 = vmatprep.subr.mxu0 0.0
        %1556 = vmatpush1.msra.mxu0 0.0
        %1557 = vmatprep.subr.mxu0 0.0
        %1558 = vmatpush1.msra.mxu0 0.0
        %1559 = vmatprep.subr.mxu0 0.0
        %1560 = vmatpush1.msra.mxu0 0.0
        %1561 = vmatprep.subr.mxu0 0.0
        %1562 = vmatpush1.msra.mxu0 0.0
        %1563 = vmatprep.subr.mxu0 0.0
        %1564 = vmatpush1.msra.mxu0 0.0
        %1565 = vmatprep.subr.mxu0 0.0
        %1566 = vmatpush1.msra.mxu0 0.0
        %1567 = vmatprep.subr.mxu0 0.0
        %1568 = vmatpush1.msra.mxu0 0.0
        %1569 = vmatprep.subr.mxu0 0.0
        %1570 = vmatpush1.msra.mxu0 0.0
        %1571 = vmatprep.subr.mxu0 0.0
        %1572 = vmatpush1.msra.mxu0 0.0
        %1573 = vmatprep.subr.mxu0 0.0
        %1574 = vmatpush1.msra.mxu0 0.0
        %1575 = vmatprep.subr.mxu0 0.0
        %1576 = vmatpush1.msra.mxu0 0.0
        %1577 = vmatprep.subr.mxu0 0.0
        %1578 = vmatpush1.msra.mxu0 0.0
        %1579 = vmatprep.subr.mxu0 0.0
        %1580 = vmatpush1.msra.mxu0 0.0
        %1581 = vmatprep.subr.mxu0 0.0
        %1582 = vmatpush1.msra.mxu0 0.0
        %1583 = vmatprep.subr.mxu0 0.0
        %1584 = vmatpush1.msra.mxu0 0.0
        %1585 = vmatprep.subr.mxu0 0.0
        %1586 = vmatpush1.msra.mxu0 0.0
        %1587 = vmatprep.subr.mxu0 0.0
        %1588 = vmatpush1.msra.mxu0 0.0
        %1589 = vmatprep.subr.mxu0 0.0
        %1590 = vmatpush1.msra.mxu0 0.0
        %1591 = vmatprep.subr.mxu0 0.0
        %1592 = vmatpush1.msra.mxu0 0.0
        %1593 = vmatprep.mubr.f32.mxu0 0.0
        %1594 = vmatmul.mubr.f32.gmra.mrb[0].mxu0 %v1527
        %v1595 = vpop.f32.mrb[0].mxu0
        %v1596 = vadd.f32 0.0, %v1595
        %v1597 = vpop.f32.mrb[0].mxu0
        %1598 = vdwg.mxu0
        %v1600 = vsel %vm674, %v1431, 0
        %1602 = vmatprep.subr.mxu0 0.0
        %1603 = vmatpush1.msra.mxu0 %v1434
        %1604 = vmatprep.subr.mxu0 0.0
        %1605 = vmatpush1.msra.mxu0 %v1435
        %1606 = vmatprep.subr.mxu0 0.0
        %1607 = vmatpush1.msra.mxu0 %v1436
        %1608 = vmatprep.subr.mxu0 0.0
        %1609 = vmatpush1.msra.mxu0 %v1437
        %1610 = vmatprep.subr.mxu0 0.0
        %1611 = vmatpush1.msra.mxu0 %v1438
        %1612 = vmatprep.subr.mxu0 0.0
        %1613 = vmatpush1.msra.mxu0 %v1439
        %1614 = vmatprep.subr.mxu0 0.0
        %1615 = vmatpush1.msra.mxu0 %v1440
        %1616 = vmatprep.subr.mxu0 0.0
        %1617 = vmatpush1.msra.mxu0 %v1441
        %1618 = vmatprep.subr.mxu0 0.0
        %1619 = vmatpush1.msra.mxu0 0.0
        %1620 = vmatprep.subr.mxu0 0.0
        %1621 = vmatpush1.msra.mxu0 0.0
        %1622 = vmatprep.subr.mxu0 0.0
        %1623 = vmatpush1.msra.mxu0 0.0
        %1624 = vmatprep.subr.mxu0 0.0
        %1625 = vmatpush1.msra.mxu0 0.0
        %1626 = vmatprep.subr.mxu0 0.0
        %1627 = vmatpush1.msra.mxu0 0.0
        %1628 = vmatprep.subr.mxu0 0.0
        %1629 = vmatpush1.msra.mxu0 0.0
        %1630 = vmatprep.subr.mxu0 0.0
        %1631 = vmatpush1.msra.mxu0 0.0
        %1632 = vmatprep.subr.mxu0 0.0
        %1633 = vmatpush1.msra.mxu0 0.0
        %1634 = vmatprep.subr.mxu0 0.0
        %1635 = vmatpush1.msra.mxu0 0.0
        %1636 = vmatprep.subr.mxu0 0.0
        %1637 = vmatpush1.msra.mxu0 0.0
        %1638 = vmatprep.subr.mxu0 0.0
        %1639 = vmatpush1.msra.mxu0 0.0
        %1640 = vmatprep.subr.mxu0 0.0
        %1641 = vmatpush1.msra.mxu0 0.0
        %1642 = vmatprep.subr.mxu0 0.0
        %1643 = vmatpush1.msra.mxu0 0.0
        %1644 = vmatprep.subr.mxu0 0.0
        %1645 = vmatpush1.msra.mxu0 0.0
        %1646 = vmatprep.subr.mxu0 0.0
        %1647 = vmatpush1.msra.mxu0 0.0
        %1648 = vmatprep.subr.mxu0 0.0
        %1649 = vmatpush1.msra.mxu0 0.0
        %1650 = vmatprep.subr.mxu0 0.0
        %1651 = vmatpush1.msra.mxu0 0.0
        %1652 = vmatprep.subr.mxu0 0.0
        %1653 = vmatpush1.msra.mxu0 0.0
        %1654 = vmatprep.subr.mxu0 0.0
        %1655 = vmatpush1.msra.mxu0 0.0
        %1656 = vmatprep.subr.mxu0 0.0
        %1657 = vmatpush1.msra.mxu0 0.0
        %1658 = vmatprep.subr.mxu0 0.0
        %1659 = vmatpush1.msra.mxu0 0.0
        %1660 = vmatprep.subr.mxu0 0.0
        %1661 = vmatpush1.msra.mxu0 0.0
        %1662 = vmatprep.subr.mxu0 0.0
        %1663 = vmatpush1.msra.mxu0 0.0
        %1664 = vmatprep.subr.mxu0 0.0
        %1665 = vmatpush1.msra.mxu0 0.0
        %1666 = vmatprep.mubr.f32.mxu0 0.0
        %1667 = vmatmul.mubr.f32.gmra.mrb[0].mxu0 %v1600
        %v1668 = vpop.f32.mrb[0].mxu0
        %v1669 = vadd.f32 %v1596, %v1668
        %v1670 = vpop.f32.mrb[0].mxu0
        %1671 = vdwg.mxu0
        %s1672 = scalar_lea.vmem %s6, 16
        %v1673 = vld [vmem:[%s1672] sm:$0xff]
        %v1675 = vsel %vm1360, %v1673, 0
        %1677 = vmatprep.subr.mxu0 0.0
        %1678 = vmatpush1.msra.mxu0 %v1358
        %1679 = vmatprep.subr.mxu0 0.0
        %1680 = vmatpush1.msra.mxu0 0.0
        %1681 = vmatprep.subr.mxu0 0.0
        %1682 = vmatpush1.msra.mxu0 0.0
        %1683 = vmatprep.subr.mxu0 0.0
        %1684 = vmatpush1.msra.mxu0 0.0
        %1685 = vmatprep.subr.mxu0 0.0
        %1686 = vmatpush1.msra.mxu0 0.0
        %1687 = vmatprep.subr.mxu0 0.0
        %1688 = vmatpush1.msra.mxu0 0.0
        %1689 = vmatprep.subr.mxu0 0.0
        %1690 = vmatpush1.msra.mxu0 0.0
        %1691 = vmatprep.subr.mxu0 0.0
        %1692 = vmatpush1.msra.mxu0 0.0
        %1693 = vmatprep.subr.mxu0 0.0
        %1694 = vmatpush1.msra.mxu0 0.0
        %1695 = vmatprep.subr.mxu0 0.0
        %1696 = vmatpush1.msra.mxu0 0.0
        %1697 = vmatprep.subr.mxu0 0.0
        %1698 = vmatpush1.msra.mxu0 0.0
        %1699 = vmatprep.subr.mxu0 0.0
        %1700 = vmatpush1.msra.mxu0 0.0
        %1701 = vmatprep.subr.mxu0 0.0
        %1702 = vmatpush1.msra.mxu0 0.0
        %1703 = vmatprep.subr.mxu0 0.0
        %1704 = vmatpush1.msra.mxu0 0.0
        %1705 = vmatprep.subr.mxu0 0.0
        %1706 = vmatpush1.msra.mxu0 0.0
        %1707 = vmatprep.subr.mxu0 0.0
        %1708 = vmatpush1.msra.mxu0 0.0
        %1709 = vmatprep.subr.mxu0 0.0
        %1710 = vmatpush1.msra.mxu0 0.0
        %1711 = vmatprep.subr.mxu0 0.0
        %1712 = vmatpush1.msra.mxu0 0.0
        %1713 = vmatprep.subr.mxu0 0.0
        %1714 = vmatpush1.msra.mxu0 0.0
        %1715 = vmatprep.subr.mxu0 0.0
        %1716 = vmatpush1.msra.mxu0 0.0
        %1717 = vmatprep.subr.mxu0 0.0
        %1718 = vmatpush1.msra.mxu0 0.0
        %1719 = vmatprep.subr.mxu0 0.0
        %1720 = vmatpush1.msra.mxu0 0.0
        %1721 = vmatprep.subr.mxu0 0.0
        %1722 = vmatpush1.msra.mxu0 0.0
        %1723 = vmatprep.subr.mxu0 0.0
        %1724 = vmatpush1.msra.mxu0 0.0
        %1725 = vmatprep.subr.mxu0 0.0
        %1726 = vmatpush1.msra.mxu0 0.0
        %1727 = vmatprep.subr.mxu0 0.0
        %1728 = vmatpush1.msra.mxu0 0.0
        %1729 = vmatprep.subr.mxu0 0.0
        %1730 = vmatpush1.msra.mxu0 0.0
        %1731 = vmatprep.subr.mxu0 0.0
        %1732 = vmatpush1.msra.mxu0 0.0
        %1733 = vmatprep.subr.mxu0 0.0
        %1734 = vmatpush1.msra.mxu0 0.0
        %1735 = vmatprep.subr.mxu0 0.0
        %1736 = vmatpush1.msra.mxu0 0.0
        %1737 = vmatprep.subr.mxu0 0.0
        %1738 = vmatpush1.msra.mxu0 0.0
        %1739 = vmatprep.subr.mxu0 0.0
        %1740 = vmatpush1.msra.mxu0 0.0
        %1741 = vmatprep.mubr.f32.mxu0 0.0
        %1742 = vmatmul.mubr.f32.gmra.mrb[0].mxu0 %v1675
        %v1743 = vpop.f32.mrb[0].mxu0
        %v1744 = vadd.f32 0.0, %v1743
        %v1745 = vpop.f32.mrb[0].mxu0
        %1746 = vdwg.mxu0
        %s1747 = scalar_lea.vmem %s7, 128
        %v1748 = vld [vmem:[%s1747] sm:$0xff]
        %v1749 = vld [vmem:[%s1747 + $0x8] sm:$0xff]
        %v1750 = vld [vmem:[%s1747 + $0x10] sm:$0xff]
        %v1751 = vld [vmem:[%s1747 + $0x18] sm:$0xff]
        %v1752 = vld [vmem:[%s1747 + $0x20] sm:$0xff]
        %v1753 = vld [vmem:[%s1747 + $0x28] sm:$0xff]
        %v1754 = vld [vmem:[%s1747 + $0x30] sm:$0xff]
        %v1755 = vld [vmem:[%s1747 + $0x38] sm:$0xff]
        %v1757 = vsel %vm674, %v1744, 0
        %1759 = vmatprep.subr.mxu0 0.0
        %1760 = vmatpush1.msra.mxu0 %v1748
        %1761 = vmatprep.subr.mxu0 0.0
        %1762 = vmatpush1.msra.mxu0 %v1749
        %1763 = vmatprep.subr.mxu0 0.0
        %1764 = vmatpush1.msra.mxu0 %v1750
        %1765 = vmatprep.subr.mxu0 0.0
        %1766 = vmatpush1.msra.mxu0 %v1751
        %1767 = vmatprep.subr.mxu0 0.0
        %1768 = vmatpush1.msra.mxu0 %v1752
        %1769 = vmatprep.subr.mxu0 0.0
        %1770 = vmatpush1.msra.mxu0 %v1753
        %1771 = vmatprep.subr.mxu0 0.0
        %1772 = vmatpush1.msra.mxu0 %v1754
        %1773 = vmatprep.subr.mxu0 0.0
        %1774 = vmatpush1.msra.mxu0 %v1755
        %1775 = vmatprep.subr.mxu0 0.0
        %1776 = vmatpush1.msra.mxu0 0.0
        %1777 = vmatprep.subr.mxu0 0.0
        %1778 = vmatpush1.msra.mxu0 0.0
        %1779 = vmatprep.subr.mxu0 0.0
        %1780 = vmatpush1.msra.mxu0 0.0
        %1781 = vmatprep.subr.mxu0 0.0
        %1782 = vmatpush1.msra.mxu0 0.0
        %1783 = vmatprep.subr.mxu0 0.0
        %1784 = vmatpush1.msra.mxu0 0.0
        %1785 = vmatprep.subr.mxu0 0.0
        %1786 = vmatpush1.msra.mxu0 0.0
        %1787 = vmatprep.subr.mxu0 0.0
        %1788 = vmatpush1.msra.mxu0 0.0
        %1789 = vmatprep.subr.mxu0 0.0
        %1790 = vmatpush1.msra.mxu0 0.0
        %1791 = vmatprep.subr.mxu0 0.0
        %1792 = vmatpush1.msra.mxu0 0.0
        %1793 = vmatprep.subr.mxu0 0.0
        %1794 = vmatpush1.msra.mxu0 0.0
        %1795 = vmatprep.subr.mxu0 0.0
        %1796 = vmatpush1.msra.mxu0 0.0
        %1797 = vmatprep.subr.mxu0 0.0
        %1798 = vmatpush1.msra.mxu0 0.0
        %1799 = vmatprep.subr.mxu0 0.0
        %1800 = vmatpush1.msra.mxu0 0.0
        %1801 = vmatprep.subr.mxu0 0.0
        %1802 = vmatpush1.msra.mxu0 0.0
        %1803 = vmatprep.subr.mxu0 0.0
        %1804 = vmatpush1.msra.mxu0 0.0
        %1805 = vmatprep.subr.mxu0 0.0
        %1806 = vmatpush1.msra.mxu0 0.0
        %1807 = vmatprep.subr.mxu0 0.0
        %1808 = vmatpush1.msra.mxu0 0.0
        %1809 = vmatprep.subr.mxu0 0.0
        %1810 = vmatpush1.msra.mxu0 0.0
        %1811 = vmatprep.subr.mxu0 0.0
        %1812 = vmatpush1.msra.mxu0 0.0
        %1813 = vmatprep.subr.mxu0 0.0
        %1814 = vmatpush1.msra.mxu0 0.0
        %1815 = vmatprep.subr.mxu0 0.0
        %1816 = vmatpush1.msra.mxu0 0.0
        %1817 = vmatprep.subr.mxu0 0.0
        %1818 = vmatpush1.msra.mxu0 0.0
        %1819 = vmatprep.subr.mxu0 0.0
        %1820 = vmatpush1.msra.mxu0 0.0
        %1821 = vmatprep.subr.mxu0 0.0
        %1822 = vmatpush1.msra.mxu0 0.0
        %1823 = vmatprep.mubr.f32.mxu0 0.0
        %1824 = vmatmul.mubr.f32.gmra.mrb[0].mxu0 %v1757
        %v1825 = vpop.f32.mrb[0].mxu0
        %v1826 = vadd.f32 0.0, %v1825
        %v1827 = vpop.f32.mrb[0].mxu0
        %1828 = vdwg.mxu0
        %v1829 = vadd.f32 %v1669, %v1826
        %v1830 = vld [vmem:[%s8] sm:$0x1]
        %v1832 = vlaneseq
        %v1833 = vshrl.u32 %v1832, 7
        %v1834 = vsub.s32 0, %v1833
        %v1835 = vrot.slane %v1830, %v1834
        %v1837 = vadd.f32 %v1829, %v1835
        %v1838 = vmax.f32 %v1837, 0.0
        %v1839 = vld [vmem:[%s9] sm:$0xff]
        %v1840 = vld [vmem:[%s9 + $0x8] sm:$0xff]
        %v1841 = vld [vmem:[%s9 + $0x10] sm:$0xff]
        %v1842 = vld [vmem:[%s9 + $0x18] sm:$0xff]
        %v1843 = vld [vmem:[%s9 + $0x20] sm:$0xff]
        %v1844 = vld [vmem:[%s9 + $0x28] sm:$0xff]
        %v1845 = vld [vmem:[%s9 + $0x30] sm:$0xff]
        %v1846 = vld [vmem:[%s9 + $0x38] sm:$0xff]
        %v1848 = vsel %vm674, %v1838, 0
        %1850 = vmatprep.subr.mxu0 0.0
        %1851 = vmatpush1.msra.mxu0 %v1839
        %1852 = vmatprep.subr.mxu0 0.0
        %1853 = vmatpush1.msra.mxu0 %v1840
        %1854 = vmatprep.subr.mxu0 0.0
        %1855 = vmatpush1.msra.mxu0 %v1841
        %1856 = vmatprep.subr.mxu0 0.0
        %1857 = vmatpush1.msra.mxu0 %v1842
        %1858 = vmatprep.subr.mxu0 0.0
        %1859 = vmatpush1.msra.mxu0 %v1843
        %1860 = vmatprep.subr.mxu0 0.0
        %1861 = vmatpush1.msra.mxu0 %v1844
        %1862 = vmatprep.subr.mxu0 0.0
        %1863 = vmatpush1.msra.mxu0 %v1845
        %1864 = vmatprep.subr.mxu0 0.0
        %1865 = vmatpush1.msra.mxu0 %v1846
        %1866 = vmatprep.subr.mxu0 0.0
        %1867 = vmatpush1.msra.mxu0 0.0
        %1868 = vmatprep.subr.mxu0 0.0
        %1869 = vmatpush1.msra.mxu0 0.0
        %1870 = vmatprep.subr.mxu0 0.0
        %1871 = vmatpush1.msra.mxu0 0.0
        %1872 = vmatprep.subr.mxu0 0.0
        %1873 = vmatpush1.msra.mxu0 0.0
        %1874 = vmatprep.subr.mxu0 0.0
        %1875 = vmatpush1.msra.mxu0 0.0
        %1876 = vmatprep.subr.mxu0 0.0
        %1877 = vmatpush1.msra.mxu0 0.0
        %1878 = vmatprep.subr.mxu0 0.0
        %1879 = vmatpush1.msra.mxu0 0.0
        %1880 = vmatprep.subr.mxu0 0.0
        %1881 = vmatpush1.msra.mxu0 0.0
        %1882 = vmatprep.subr.mxu0 0.0
        %1883 = vmatpush1.msra.mxu0 0.0
        %1884 = vmatprep.subr.mxu0 0.0
        %1885 = vmatpush1.msra.mxu0 0.0
        %1886 = vmatprep.subr.mxu0 0.0
        %1887 = vmatpush1.msra.mxu0 0.0
        %1888 = vmatprep.subr.mxu0 0.0
        %1889 = vmatpush1.msra.mxu0 0.0
        %1890 = vmatprep.subr.mxu0 0.0
        %1891 = vmatpush1.msra.mxu0 0.0
        %1892 = vmatprep.subr.mxu0 0.0
        %1893 = vmatpush1.msra.mxu0 0.0
        %1894 = vmatprep.subr.mxu0 0.0
        %1895 = vmatpush1.msra.mxu0 0.0
        %1896 = vmatprep.subr.mxu0 0.0
        %1897 = vmatpush1.msra.mxu0 0.0
        %1898 = vmatprep.subr.mxu0 0.0
        %1899 = vmatpush1.msra.mxu0 0.0
        %1900 = vmatprep.subr.mxu0 0.0
        %1901 = vmatpush1.msra.mxu0 0.0
        %1902 = vmatprep.subr.mxu0 0.0
        %1903 = vmatpush1.msra.mxu0 0.0
        %1904 = vmatprep.subr.mxu0 0.0
        %1905 = vmatpush1.msra.mxu0 0.0
        %1906 = vmatprep.subr.mxu0 0.0
        %1907 = vmatpush1.msra.mxu0 0.0
        %1908 = vmatprep.subr.mxu0 0.0
        %1909 = vmatpush1.msra.mxu0 0.0
        %1910 = vmatprep.subr.mxu0 0.0
        %1911 = vmatpush1.msra.mxu0 0.0
        %1912 = vmatprep.subr.mxu0 0.0
        %1913 = vmatpush1.msra.mxu0 0.0
        %1914 = vmatprep.mubr.f32.mxu0 0.0
        %1915 = vmatmul.mubr.f32.gmra.mrb[0].mxu0 %v1848
        %v1916 = vpop.f32.mrb[0].mxu0
        %v1917 = vadd.f32 0.0, %v1916
        %v1918 = vpop.f32.mrb[0].mxu0
        %1919 = vdwg.mxu0
        %s1920 = scalar_lea.vmem %s9, 64
        %v1921 = vld [vmem:[%s1920] sm:$0xff]
        %v1922 = vld [vmem:[%s1920 + $0x8] sm:$0xff]
        %v1923 = vld [vmem:[%s1920 + $0x10] sm:$0xff]
        %v1924 = vld [vmem:[%s1920 + $0x18] sm:$0xff]
        %v1925 = vld [vmem:[%s1920 + $0x20] sm:$0xff]
        %v1926 = vld [vmem:[%s1920 + $0x28] sm:$0xff]
        %v1927 = vld [vmem:[%s1920 + $0x30] sm:$0xff]
        %v1928 = vld [vmem:[%s1920 + $0x38] sm:$0xff]
        %1929 = vmatprep.subr.mxu0 0.0
        %1930 = vmatpush1.msra.mxu0 %v1921
        %1931 = vmatprep.subr.mxu0 0.0
        %1932 = vmatpush1.msra.mxu0 %v1922
        %1933 = vmatprep.subr.mxu0 0.0
        %1934 = vmatpush1.msra.mxu0 %v1923
        %1935 = vmatprep.subr.mxu0 0.0
        %1936 = vmatpush1.msra.mxu0 %v1924
        %1937 = vmatprep.subr.mxu0 0.0
        %1938 = vmatpush1.msra.mxu0 %v1925
        %1939 = vmatprep.subr.mxu0 0.0
        %1940 = vmatpush1.msra.mxu0 %v1926
        %1941 = vmatprep.subr.mxu0 0.0
        %1942 = vmatpush1.msra.mxu0 %v1927
        %1943 = vmatprep.subr.mxu0 0.0
        %1944 = vmatpush1.msra.mxu0 %v1928
        %1945 = vmatprep.subr.mxu0 0.0
        %1946 = vmatpush1.msra.mxu0 0.0
        %1947 = vmatprep.subr.mxu0 0.0
        %1948 = vmatpush1.msra.mxu0 0.0
        %1949 = vmatprep.subr.mxu0 0.0
        %1950 = vmatpush1.msra.mxu0 0.0
        %1951 = vmatprep.subr.mxu0 0.0
        %1952 = vmatpush1.msra.mxu0 0.0
        %1953 = vmatprep.subr.mxu0 0.0
        %1954 = vmatpush1.msra.mxu0 0.0
        %1955 = vmatprep.subr.mxu0 0.0
        %1956 = vmatpush1.msra.mxu0 0.0
        %1957 = vmatprep.subr.mxu0 0.0
        %1958 = vmatpush1.msra.mxu0 0.0
        %1959 = vmatprep.subr.mxu0 0.0
        %1960 = vmatpush1.msra.mxu0 0.0
        %1961 = vmatprep.subr.mxu0 0.0
        %1962 = vmatpush1.msra.mxu0 0.0
        %1963 = vmatprep.subr.mxu0 0.0
        %1964 = vmatpush1.msra.mxu0 0.0
        %1965 = vmatprep.subr.mxu0 0.0
        %1966 = vmatpush1.msra.mxu0 0.0
        %1967 = vmatprep.subr.mxu0 0.0
        %1968 = vmatpush1.msra.mxu0 0.0
        %1969 = vmatprep.subr.mxu0 0.0
        %1970 = vmatpush1.msra.mxu0 0.0
        %1971 = vmatprep.subr.mxu0 0.0
        %1972 = vmatpush1.msra.mxu0 0.0
        %1973 = vmatprep.subr.mxu0 0.0
        %1974 = vmatpush1.msra.mxu0 0.0
        %1975 = vmatprep.subr.mxu0 0.0
        %1976 = vmatpush1.msra.mxu0 0.0
        %1977 = vmatprep.subr.mxu0 0.0
        %1978 = vmatpush1.msra.mxu0 0.0
        %1979 = vmatprep.subr.mxu0 0.0
        %1980 = vmatpush1.msra.mxu0 0.0
        %1981 = vmatprep.subr.mxu0 0.0
        %1982 = vmatpush1.msra.mxu0 0.0
        %1983 = vmatprep.subr.mxu0 0.0
        %1984 = vmatpush1.msra.mxu0 0.0
        %1985 = vmatprep.subr.mxu0 0.0
        %1986 = vmatpush1.msra.mxu0 0.0
        %1987 = vmatprep.subr.mxu0 0.0
        %1988 = vmatpush1.msra.mxu0 0.0
        %1989 = vmatprep.subr.mxu0 0.0
        %1990 = vmatpush1.msra.mxu0 0.0
        %1991 = vmatprep.subr.mxu0 0.0
        %1992 = vmatpush1.msra.mxu0 0.0
        %1993 = vmatprep.mubr.f32.mxu0 0.0
        %1994 = vmatmul.mubr.f32.gmra.mrb[0].mxu0 %v1848
        %v1995 = vpop.f32.mrb[0].mxu0
        %v1996 = vadd.f32 0.0, %v1995
        %v1997 = vpop.f32.mrb[0].mxu0
        %1998 = vdwg.mxu0
        %v1999 = vmax.f32 %v1917, %v1996
        %v2000 = vld [vmem:[%s10] sm:$0xf]
        %v2002 = vsel %vm1360, %v2000, 0
        %2004 = vmatprep.subr.mxu0 0.0
        %2005 = vmatpush1.msra.mxu0 %v1999
        %2006 = vmatprep.subr.mxu0 0.0
        %2007 = vmatpush1.msra.mxu0 0.0
        %2008 = vmatprep.subr.mxu0 0.0
        %2009 = vmatpush1.msra.mxu0 0.0
        %2010 = vmatprep.subr.mxu0 0.0
        %2011 = vmatpush1.msra.mxu0 0.0
        %2012 = vmatprep.subr.mxu0 0.0
        %2013 = vmatpush1.msra.mxu0 0.0
        %2014 = vmatprep.subr.mxu0 0.0
        %2015 = vmatpush1.msra.mxu0 0.0
        %2016 = vmatprep.subr.mxu0 0.0
        %2017 = vmatpush1.msra.mxu0 0.0
        %2018 = vmatprep.subr.mxu0 0.0
        %2019 = vmatpush1.msra.mxu0 0.0
        %2020 = vmatprep.subr.mxu0 0.0
        %2021 = vmatpush1.msra.mxu0 0.0
        %2022 = vmatprep.subr.mxu0 0.0
        %2023 = vmatpush1.msra.mxu0 0.0
        %2024 = vmatprep.subr.mxu0 0.0
        %2025 = vmatpush1.msra.mxu0 0.0
        %2026 = vmatprep.subr.mxu0 0.0
        %2027 = vmatpush1.msra.mxu0 0.0
        %2028 = vmatprep.subr.mxu0 0.0
        %2029 = vmatpush1.msra.mxu0 0.0
        %2030 = vmatprep.subr.mxu0 0.0
        %2031 = vmatpush1.msra.mxu0 0.0
        %2032 = vmatprep.subr.mxu0 0.0
        %2033 = vmatpush1.msra.mxu0 0.0
        %2034 = vmatprep.subr.mxu0 0.0
        %2035 = vmatpush1.msra.mxu0 0.0
        %2036 = vmatprep.subr.mxu0 0.0
        %2037 = vmatpush1.msra.mxu0 0.0
        %2038 = vmatprep.subr.mxu0 0.0
        %2039 = vmatpush1.msra.mxu0 0.0
        %2040 = vmatprep.subr.mxu0 0.0
        %2041 = vmatpush1.msra.mxu0 0.0
        %2042 = vmatprep.subr.mxu0 0.0
        %2043 = vmatpush1.msra.mxu0 0.0
        %2044 = vmatprep.subr.mxu0 0.0
        %2045 = vmatpush1.msra.mxu0 0.0
        %2046 = vmatprep.subr.mxu0 0.0
        %2047 = vmatpush1.msra.mxu0 0.0
        %2048 = vmatprep.subr.mxu0 0.0
        %2049 = vmatpush1.msra.mxu0 0.0
        %2050 = vmatprep.subr.mxu0 0.0
        %2051 = vmatpush1.msra.mxu0 0.0
        %2052 = vmatprep.subr.mxu0 0.0
        %2053 = vmatpush1.msra.mxu0 0.0
        %2054 = vmatprep.subr.mxu0 0.0
        %2055 = vmatpush1.msra.mxu0 0.0
        %2056 = vmatprep.subr.mxu0 0.0
        %2057 = vmatpush1.msra.mxu0 0.0
        %2058 = vmatprep.subr.mxu0 0.0
        %2059 = vmatpush1.msra.mxu0 0.0
        %2060 = vmatprep.subr.mxu0 0.0
        %2061 = vmatpush1.msra.mxu0 0.0
        %2062 = vmatprep.subr.mxu0 0.0
        %2063 = vmatpush1.msra.mxu0 0.0
        %2064 = vmatprep.subr.mxu0 0.0
        %2065 = vmatpush1.msra.mxu0 0.0
        %2066 = vmatprep.subr.mxu0 0.0
        %2067 = vmatpush1.msra.mxu0 0.0
        %2068 = vmatprep.mubr.f32.mxu0 0.0
        %2069 = vmatmul.mubr.f32.gmra.mrb[0].mxu0 %v2002
        %v2070 = vpop.f32.mrb[0].mxu0
        %v2071 = vadd.f32 0.0, %v2070
        %v2072 = vpop.f32.mrb[0].mxu0
        %2073 = vdwg.mxu0
        %s2074 = scalar_lea.vmem %s10, 4
        %v2075 = vld [vmem:[%s2074] sm:$0xf]
        %v2077 = vsel %vm1360, %v2075, 0
        %2079 = vmatprep.subr.mxu0 0.0
        %2080 = vmatpush1.msra.mxu0 %v1999
        %2081 = vmatprep.subr.mxu0 0.0
        %2082 = vmatpush1.msra.mxu0 0.0
        %2083 = vmatprep.subr.mxu0 0.0
        %2084 = vmatpush1.msra.mxu0 0.0
        %2085 = vmatprep.subr.mxu0 0.0
        %2086 = vmatpush1.msra.mxu0 0.0
        %2087 = vmatprep.subr.mxu0 0.0
        %2088 = vmatpush1.msra.mxu0 0.0
        %2089 = vmatprep.subr.mxu0 0.0
        %2090 = vmatpush1.msra.mxu0 0.0
        %2091 = vmatprep.subr.mxu0 0.0
        %2092 = vmatpush1.msra.mxu0 0.0
        %2093 = vmatprep.subr.mxu0 0.0
        %2094 = vmatpush1.msra.mxu0 0.0
        %2095 = vmatprep.subr.mxu0 0.0
        %2096 = vmatpush1.msra.mxu0 0.0
        %2097 = vmatprep.subr.mxu0 0.0
        %2098 = vmatpush1.msra.mxu0 0.0
        %2099 = vmatprep.subr.mxu0 0.0
        %2100 = vmatpush1.msra.mxu0 0.0
        %2101 = vmatprep.subr.mxu0 0.0
        %2102 = vmatpush1.msra.mxu0 0.0
        %2103 = vmatprep.subr.mxu0 0.0
        %2104 = vmatpush1.msra.mxu0 0.0
        %2105 = vmatprep.subr.mxu0 0.0
        %2106 = vmatpush1.msra.mxu0 0.0
        %2107 = vmatprep.subr.mxu0 0.0
        %2108 = vmatpush1.msra.mxu0 0.0
        %2109 = vmatprep.subr.mxu0 0.0
        %2110 = vmatpush1.msra.mxu0 0.0
        %2111 = vmatprep.subr.mxu0 0.0
        %2112 = vmatpush1.msra.mxu0 0.0
        %2113 = vmatprep.subr.mxu0 0.0
        %2114 = vmatpush1.msra.mxu0 0.0
        %2115 = vmatprep.subr.mxu0 0.0
        %2116 = vmatpush1.msra.mxu0 0.0
        %2117 = vmatprep.subr.mxu0 0.0
        %2118 = vmatpush1.msra.mxu0 0.0
        %2119 = vmatprep.subr.mxu0 0.0
        %2120 = vmatpush1.msra.mxu0 0.0
        %2121 = vmatprep.subr.mxu0 0.0
        %2122 = vmatpush1.msra.mxu0 0.0
        %2123 = vmatprep.subr.mxu0 0.0
        %2124 = vmatpush1.msra.mxu0 0.0
        %2125 = vmatprep.subr.mxu0 0.0
        %2126 = vmatpush1.msra.mxu0 0.0
        %2127 = vmatprep.subr.mxu0 0.0
        %2128 = vmatpush1.msra.mxu0 0.0
        %2129 = vmatprep.subr.mxu0 0.0
        %2130 = vmatpush1.msra.mxu0 0.0
        %2131 = vmatprep.subr.mxu0 0.0
        %2132 = vmatpush1.msra.mxu0 0.0
        %2133 = vmatprep.subr.mxu0 0.0
        %2134 = vmatpush1.msra.mxu0 0.0
        %2135 = vmatprep.subr.mxu0 0.0
        %2136 = vmatpush1.msra.mxu0 0.0
        %2137 = vmatprep.subr.mxu0 0.0
        %2138 = vmatpush1.msra.mxu0 0.0
        %2139 = vmatprep.subr.mxu0 0.0
        %2140 = vmatpush1.msra.mxu0 0.0
        %2141 = vmatprep.subr.mxu0 0.0
        %2142 = vmatpush1.msra.mxu0 0.0
        %2143 = vmatprep.mubr.f32.mxu0 0.0
        %2144 = vmatmul.mubr.f32.gmra.mrb[0].mxu0 %v2077
        %v2145 = vpop.f32.mrb[0].mxu0
        %v2146 = vadd.f32 0.0, %v2145
        %v2147 = vpop.f32.mrb[0].mxu0
        %2148 = vdwg.mxu0
        %v2149 = vmax.f32 %v2071, %v2146
        %v2150 = vld [vmem:[%s12] sm:$0x1]
        %v2151 = vld [vmem:[#allocation7] sm:$0xff]
        %v2152 = vld [vmem:[#allocation7 + $0x8] sm:$0xff]
        %v2153 = vld [vmem:[#allocation7 + $0x10] sm:$0xff]
        %v2154 = vld [vmem:[#allocation7 + $0x18] sm:$0xff]
        %vm2155 = vcmask 261120
        %v2157 = vsel %vm2155, %v2149, 0
        %2159 = vmatprep.subr.mxu0 0.0
        %2160 = vmatpush1.msra.mxu0 %v2151
        %2161 = vmatprep.subr.mxu0 0.0
        %2162 = vmatpush1.msra.mxu0 %v2152
        %2163 = vmatprep.subr.mxu0 0.0
        %2164 = vmatpush1.msra.mxu0 %v2153
        %2165 = vmatprep.subr.mxu0 0.0
        %2166 = vmatpush1.msra.mxu0 %v2154
        %2167 = vmatprep.subr.mxu0 0.0
        %2168 = vmatpush1.msra.mxu0 0.0
        %2169 = vmatprep.subr.mxu0 0.0
        %2170 = vmatpush1.msra.mxu0 0.0
        %2171 = vmatprep.subr.mxu0 0.0
        %2172 = vmatpush1.msra.mxu0 0.0
        %2173 = vmatprep.subr.mxu0 0.0
        %2174 = vmatpush1.msra.mxu0 0.0
        %2175 = vmatprep.subr.mxu0 0.0
        %2176 = vmatpush1.msra.mxu0 0.0
        %2177 = vmatprep.subr.mxu0 0.0
        %2178 = vmatpush1.msra.mxu0 0.0
        %2179 = vmatprep.subr.mxu0 0.0
        %2180 = vmatpush1.msra.mxu0 0.0
        %2181 = vmatprep.subr.mxu0 0.0
        %2182 = vmatpush1.msra.mxu0 0.0
        %2183 = vmatprep.subr.mxu0 0.0
        %2184 = vmatpush1.msra.mxu0 0.0
        %2185 = vmatprep.subr.mxu0 0.0
        %2186 = vmatpush1.msra.mxu0 0.0
        %2187 = vmatprep.subr.mxu0 0.0
        %2188 = vmatpush1.msra.mxu0 0.0
        %2189 = vmatprep.subr.mxu0 0.0
        %2190 = vmatpush1.msra.mxu0 0.0
        %2191 = vmatprep.subr.mxu0 0.0
        %2192 = vmatpush1.msra.mxu0 0.0
        %2193 = vmatprep.subr.mxu0 0.0
        %2194 = vmatpush1.msra.mxu0 0.0
        %2195 = vmatprep.subr.mxu0 0.0
        %2196 = vmatpush1.msra.mxu0 0.0
        %2197 = vmatprep.subr.mxu0 0.0
        %2198 = vmatpush1.msra.mxu0 0.0
        %2199 = vmatprep.subr.mxu0 0.0
        %2200 = vmatpush1.msra.mxu0 0.0
        %2201 = vmatprep.subr.mxu0 0.0
        %2202 = vmatpush1.msra.mxu0 0.0
        %2203 = vmatprep.subr.mxu0 0.0
        %2204 = vmatpush1.msra.mxu0 0.0
        %2205 = vmatprep.subr.mxu0 0.0
        %2206 = vmatpush1.msra.mxu0 0.0
        %2207 = vmatprep.subr.mxu0 0.0
        %2208 = vmatpush1.msra.mxu0 0.0
        %2209 = vmatprep.subr.mxu0 0.0
        %2210 = vmatpush1.msra.mxu0 0.0
        %2211 = vmatprep.subr.mxu0 0.0
        %2212 = vmatpush1.msra.mxu0 0.0
        %2213 = vmatprep.subr.mxu0 0.0
        %2214 = vmatpush1.msra.mxu0 0.0
        %2215 = vmatprep.subr.mxu0 0.0
        %2216 = vmatpush1.msra.mxu0 0.0
        %2217 = vmatprep.subr.mxu0 0.0
        %2218 = vmatpush1.msra.mxu0 0.0
        %2219 = vmatprep.subr.mxu0 0.0
        %2220 = vmatpush1.msra.mxu0 0.0
        %2221 = vmatprep.subr.mxu0 0.0
        %2222 = vmatpush1.msra.mxu0 0.0
        %2223 = vmatprep.mubr.f32.mxu0 0.0
        %2224 = vmatmul.mubr.f32.gmra.mrb[0].mxu0 %v2157
        %v2225 = vpop.f32.mrb[0].mxu0
        %v2226 = vadd.f32 0.0, %v2225
        %v2227 = vpop.f32.mrb[0].mxu0
        %2228 = vdwg.mxu0
        %v2229 = vadd.f32 %v2150, %v2226
        %s2230 = scalar_lea.vmem [#allocation7], 32
        %v2231 = vld [vmem:[%s2230] sm:$0xff]
        %v2232 = vld [vmem:[%s2230 + $0x8] sm:$0xff]
        %v2233 = vld [vmem:[%s2230 + $0x10] sm:$0xff]
        %v2234 = vld [vmem:[%s2230 + $0x18] sm:$0xff]
        %v2235 = vrot.slane %v2149, 1
        %v2236 = vsel %vm2155, %v2235, 0
        %2238 = vmatprep.subr.mxu0 0.0
        %2239 = vmatpush1.msra.mxu0 %v2231
        %2240 = vmatprep.subr.mxu0 0.0
        %2241 = vmatpush1.msra.mxu0 %v2232
        %2242 = vmatprep.subr.mxu0 0.0
        %2243 = vmatpush1.msra.mxu0 %v2233
        %2244 = vmatprep.subr.mxu0 0.0
        %2245 = vmatpush1.msra.mxu0 %v2234
        %2246 = vmatprep.subr.mxu0 0.0
        %2247 = vmatpush1.msra.mxu0 0.0
        %2248 = vmatprep.subr.mxu0 0.0
        %2249 = vmatpush1.msra.mxu0 0.0
        %2250 = vmatprep.subr.mxu0 0.0
        %2251 = vmatpush1.msra.mxu0 0.0
        %2252 = vmatprep.subr.mxu0 0.0
        %2253 = vmatpush1.msra.mxu0 0.0
        %2254 = vmatprep.subr.mxu0 0.0
        %2255 = vmatpush1.msra.mxu0 0.0
        %2256 = vmatprep.subr.mxu0 0.0
        %2257 = vmatpush1.msra.mxu0 0.0
        %2258 = vmatprep.subr.mxu0 0.0
        %2259 = vmatpush1.msra.mxu0 0.0
        %2260 = vmatprep.subr.mxu0 0.0
        %2261 = vmatpush1.msra.mxu0 0.0
        %2262 = vmatprep.subr.mxu0 0.0
        %2263 = vmatpush1.msra.mxu0 0.0
        %2264 = vmatprep.subr.mxu0 0.0
        %2265 = vmatpush1.msra.mxu0 0.0
        %2266 = vmatprep.subr.mxu0 0.0
        %2267 = vmatpush1.msra.mxu0 0.0
        %2268 = vmatprep.subr.mxu0 0.0
        %2269 = vmatpush1.msra.mxu0 0.0
        %2270 = vmatprep.subr.mxu0 0.0
        %2271 = vmatpush1.msra.mxu0 0.0
        %2272 = vmatprep.subr.mxu0 0.0
        %2273 = vmatpush1.msra.mxu0 0.0
        %2274 = vmatprep.subr.mxu0 0.0
        %2275 = vmatpush1.msra.mxu0 0.0
        %2276 = vmatprep.subr.mxu0 0.0
        %2277 = vmatpush1.msra.mxu0 0.0
        %2278 = vmatprep.subr.mxu0 0.0
        %2279 = vmatpush1.msra.mxu0 0.0
        %2280 = vmatprep.subr.mxu0 0.0
        %2281 = vmatpush1.msra.mxu0 0.0
        %2282 = vmatprep.subr.mxu0 0.0
        %2283 = vmatpush1.msra.mxu0 0.0
        %2284 = vmatprep.subr.mxu0 0.0
        %2285 = vmatpush1.msra.mxu0 0.0
        %2286 = vmatprep.subr.mxu0 0.0
        %2287 = vmatpush1.msra.mxu0 0.0
        %2288 = vmatprep.subr.mxu0 0.0
        %2289 = vmatpush1.msra.mxu0 0.0
        %2290 = vmatprep.subr.mxu0 0.0
        %2291 = vmatpush1.msra.mxu0 0.0
        %2292 = vmatprep.subr.mxu0 0.0
        %2293 = vmatpush1.msra.mxu0 0.0
        %2294 = vmatprep.subr.mxu0 0.0
        %2295 = vmatpush1.msra.mxu0 0.0
        %2296 = vmatprep.subr.mxu0 0.0
        %2297 = vmatpush1.msra.mxu0 0.0
        %2298 = vmatprep.subr.mxu0 0.0
        %2299 = vmatpush1.msra.mxu0 0.0
        %2300 = vmatprep.subr.mxu0 0.0
        %2301 = vmatpush1.msra.mxu0 0.0
        %2302 = vmatprep.mubr.f32.mxu0 0.0
        %2303 = vmatmul.mubr.f32.gmra.mrb[0].mxu0 %v2236
        %v2304 = vpop.f32.mrb[0].mxu0
        %v2305 = vadd.f32 0.0, %v2304
        %v2306 = vpop.f32.mrb[0].mxu0
        %2307 = vdwg.mxu0
        %v2308 = vadd.f32 %v2229, %v2305
        %s2309 = scalar_lea.vmem [#allocation7], 64
        %v2310 = vld [vmem:[%s2309] sm:$0xff]
        %v2311 = vld [vmem:[%s2309 + $0x8] sm:$0xff]
        %v2312 = vld [vmem:[%s2309 + $0x10] sm:$0xff]
        %v2313 = vld [vmem:[%s2309 + $0x18] sm:$0xff]
        %v2314 = vrot.slane %v2149, 2
        %v2315 = vsel %vm2155, %v2314, 0
        %2317 = vmatprep.subr.mxu0 0.0
        %2318 = vmatpush1.msra.mxu0 %v2310
        %2319 = vmatprep.subr.mxu0 0.0
        %2320 = vmatpush1.msra.mxu0 %v2311
        %2321 = vmatprep.subr.mxu0 0.0
        %2322 = vmatpush1.msra.mxu0 %v2312
        %2323 = vmatprep.subr.mxu0 0.0
        %2324 = vmatpush1.msra.mxu0 %v2313
        %2325 = vmatprep.subr.mxu0 0.0
        %2326 = vmatpush1.msra.mxu0 0.0
        %2327 = vmatprep.subr.mxu0 0.0
        %2328 = vmatpush1.msra.mxu0 0.0
        %2329 = vmatprep.subr.mxu0 0.0
        %2330 = vmatpush1.msra.mxu0 0.0
        %2331 = vmatprep.subr.mxu0 0.0
        %2332 = vmatpush1.msra.mxu0 0.0
        %2333 = vmatprep.subr.mxu0 0.0
        %2334 = vmatpush1.msra.mxu0 0.0
        %2335 = vmatprep.subr.mxu0 0.0
        %2336 = vmatpush1.msra.mxu0 0.0
        %2337 = vmatprep.subr.mxu0 0.0
        %2338 = vmatpush1.msra.mxu0 0.0
        %2339 = vmatprep.subr.mxu0 0.0
        %2340 = vmatpush1.msra.mxu0 0.0
        %2341 = vmatprep.subr.mxu0 0.0
        %2342 = vmatpush1.msra.mxu0 0.0
        %2343 = vmatprep.subr.mxu0 0.0
        %2344 = vmatpush1.msra.mxu0 0.0
        %2345 = vmatprep.subr.mxu0 0.0
        %2346 = vmatpush1.msra.mxu0 0.0
        %2347 = vmatprep.subr.mxu0 0.0
        %2348 = vmatpush1.msra.mxu0 0.0
        %2349 = vmatprep.subr.mxu0 0.0
        %2350 = vmatpush1.msra.mxu0 0.0
        %2351 = vmatprep.subr.mxu0 0.0
        %2352 = vmatpush1.msra.mxu0 0.0
        %2353 = vmatprep.subr.mxu0 0.0
        %2354 = vmatpush1.msra.mxu0 0.0
        %2355 = vmatprep.subr.mxu0 0.0
        %2356 = vmatpush1.msra.mxu0 0.0
        %2357 = vmatprep.subr.mxu0 0.0
        %2358 = vmatpush1.msra.mxu0 0.0
        %2359 = vmatprep.subr.mxu0 0.0
        %2360 = vmatpush1.msra.mxu0 0.0
        %2361 = vmatprep.subr.mxu0 0.0
        %2362 = vmatpush1.msra.mxu0 0.0
        %2363 = vmatprep.subr.mxu0 0.0
        %2364 = vmatpush1.msra.mxu0 0.0
        %2365 = vmatprep.subr.mxu0 0.0
        %2366 = vmatpush1.msra.mxu0 0.0
        %2367 = vmatprep.subr.mxu0 0.0
        %2368 = vmatpush1.msra.mxu0 0.0
        %2369 = vmatprep.subr.mxu0 0.0
        %2370 = vmatpush1.msra.mxu0 0.0
        %2371 = vmatprep.subr.mxu0 0.0
        %2372 = vmatpush1.msra.mxu0 0.0
        %2373 = vmatprep.subr.mxu0 0.0
        %2374 = vmatpush1.msra.mxu0 0.0
        %2375 = vmatprep.subr.mxu0 0.0
        %2376 = vmatpush1.msra.mxu0 0.0
        %2377 = vmatprep.subr.mxu0 0.0
        %2378 = vmatpush1.msra.mxu0 0.0
        %2379 = vmatprep.subr.mxu0 0.0
        %2380 = vmatpush1.msra.mxu0 0.0
        %2381 = vmatprep.mubr.f32.mxu0 0.0
        %2382 = vmatmul.mubr.f32.gmra.mrb[0].mxu0 %v2315
        %v2383 = vpop.f32.mrb[0].mxu0
        %v2384 = vadd.f32 0.0, %v2383
        %v2385 = vpop.f32.mrb[0].mxu0
        %2386 = vdwg.mxu0
        %v2387 = vadd.f32 %v2308, %v2384
        %s2388 = scalar_lea.vmem [#allocation7], 96
        %v2389 = vld [vmem:[%s2388] sm:$0xff]
        %v2390 = vld [vmem:[%s2388 + $0x8] sm:$0xff]
        %v2391 = vld [vmem:[%s2388 + $0x10] sm:$0xff]
        %v2392 = vld [vmem:[%s2388 + $0x18] sm:$0xff]
        %v2393 = vrot.slane %v2149, 3
        %v2394 = vsel %vm2155, %v2393, 0
        %2396 = vmatprep.subr.mxu0 0.0
        %2397 = vmatpush1.msra.mxu0 %v2389
        %2398 = vmatprep.subr.mxu0 0.0
        %2399 = vmatpush1.msra.mxu0 %v2390
        %2400 = vmatprep.subr.mxu0 0.0
        %2401 = vmatpush1.msra.mxu0 %v2391
        %2402 = vmatprep.subr.mxu0 0.0
        %2403 = vmatpush1.msra.mxu0 %v2392
        %2404 = vmatprep.subr.mxu0 0.0
        %2405 = vmatpush1.msra.mxu0 0.0
        %2406 = vmatprep.subr.mxu0 0.0
        %2407 = vmatpush1.msra.mxu0 0.0
        %2408 = vmatprep.subr.mxu0 0.0
        %2409 = vmatpush1.msra.mxu0 0.0
        %2410 = vmatprep.subr.mxu0 0.0
        %2411 = vmatpush1.msra.mxu0 0.0
        %2412 = vmatprep.subr.mxu0 0.0
        %2413 = vmatpush1.msra.mxu0 0.0
        %2414 = vmatprep.subr.mxu0 0.0
        %2415 = vmatpush1.msra.mxu0 0.0
        %2416 = vmatprep.subr.mxu0 0.0
        %2417 = vmatpush1.msra.mxu0 0.0
        %2418 = vmatprep.subr.mxu0 0.0
        %2419 = vmatpush1.msra.mxu0 0.0
        %2420 = vmatprep.subr.mxu0 0.0
        %2421 = vmatpush1.msra.mxu0 0.0
        %2422 = vmatprep.subr.mxu0 0.0
        %2423 = vmatpush1.msra.mxu0 0.0
        %2424 = vmatprep.subr.mxu0 0.0
        %2425 = vmatpush1.msra.mxu0 0.0
        %2426 = vmatprep.subr.mxu0 0.0
        %2427 = vmatpush1.msra.mxu0 0.0
        %2428 = vmatprep.subr.mxu0 0.0
        %2429 = vmatpush1.msra.mxu0 0.0
        %2430 = vmatprep.subr.mxu0 0.0
        %2431 = vmatpush1.msra.mxu0 0.0
        %2432 = vmatprep.subr.mxu0 0.0
        %2433 = vmatpush1.msra.mxu0 0.0
        %2434 = vmatprep.subr.mxu0 0.0
        %2435 = vmatpush1.msra.mxu0 0.0
        %2436 = vmatprep.subr.mxu0 0.0
        %2437 = vmatpush1.msra.mxu0 0.0
        %2438 = vmatprep.subr.mxu0 0.0
        %2439 = vmatpush1.msra.mxu0 0.0
        %2440 = vmatprep.subr.mxu0 0.0
        %2441 = vmatpush1.msra.mxu0 0.0
        %2442 = vmatprep.subr.mxu0 0.0
        %2443 = vmatpush1.msra.mxu0 0.0
        %2444 = vmatprep.subr.mxu0 0.0
        %2445 = vmatpush1.msra.mxu0 0.0
        %2446 = vmatprep.subr.mxu0 0.0
        %2447 = vmatpush1.msra.mxu0 0.0
        %2448 = vmatprep.subr.mxu0 0.0
        %2449 = vmatpush1.msra.mxu0 0.0
        %2450 = vmatprep.subr.mxu0 0.0
        %2451 = vmatpush1.msra.mxu0 0.0
        %2452 = vmatprep.subr.mxu0 0.0
        %2453 = vmatpush1.msra.mxu0 0.0
        %2454 = vmatprep.subr.mxu0 0.0
        %2455 = vmatpush1.msra.mxu0 0.0
        %2456 = vmatprep.subr.mxu0 0.0
        %2457 = vmatpush1.msra.mxu0 0.0
        %2458 = vmatprep.subr.mxu0 0.0
        %2459 = vmatpush1.msra.mxu0 0.0
        %2460 = vmatprep.mubr.f32.mxu0 0.0
        %2461 = vmatmul.mubr.f32.gmra.mrb[0].mxu0 %v2394
        %v2462 = vpop.f32.mrb[0].mxu0
        %v2463 = vadd.f32 0.0, %v2462
        %v2464 = vpop.f32.mrb[0].mxu0
        %2465 = vdwg.mxu0
        %v2466 = vadd.f32 %v2387, %v2463
        %2467 = vst [vmem:[%s486] sm:$0x1] %v2466
        %s2468 = sand.u32 %s317, 1
        %s2469 = scalar_lea.sflag [#allocation4], %s2468
        %s2470 = sand.u32 %s317, 1
        %s2471 = scalar_lea.vmem [#allocation8], %s2470
        // Predicated region
        $region85: #{tpu_custom_call.1} parent=71 // pred_check
          %p2472 = pneg %p327
        $region86: #{tpu_custom_call.1} parent=71 // pred_check_branch
          %2474 = sbr.rel (%p2472) target = $region88
        $region87: #{tpu_custom_call.1} parent=71 // pred_region
          %s2476 = ssub.s32 16, 16
          %2477 = vsyncadd %s2469, %s2476
          %s2478 = smul.addr %s31, 16
          %s2479 = scalar_lea.hbm %s13, %s2478
          %s2481 = sshll.u32 %s2471, 4
          %s2482 = int_to_ptr.vmem [resolvable:$true] %s2481
          %2484 = dma.vmem_to_hbm [thread:$0]  %s2482, 16, %s2479, %s2469
        $region88: #{tpu_custom_call.1} parent=71 // pred_fallthru
          _
      $region72: #{tpu_custom_call.1} parent=5 // pred_fallthru
        _
      %p2485 = scmp.le.s32.totalorder 2, %s26
      // Predicated region
      $region89: #{tpu_custom_call.1} parent=5 // pred_check
        %p2486 = pneg %p2485
      $region90: #{tpu_custom_call.1} parent=5 // pred_check_branch
        %2488 = sbr.rel (%p2486) target = $region92
      $region91: #{tpu_custom_call.1} parent=5 // pred_region
        %s2489 = ssub.s32 %s26, 2
        // Predicated region
        $region93: #{tpu_custom_call.1} parent=91 // pred_check
          %p2490 = pneg %p333
        $region94: #{tpu_custom_call.1} parent=91 // pred_check_branch
          %2492 = sbr.rel (%p2490) target = $region96
        $region95: #{tpu_custom_call.1} parent=91 // pred_region
          %s2493 = sand.u32 %s318, 1
          %s2494 = scalar_lea.sflag [#allocation4], %s2493
          %s2495 = sand.u32 %s318, 1
          %s2496 = scalar_lea.vmem [#allocation8], %s2495
          %2497 = dma.done %s2494, 16
        $region96: #{tpu_custom_call.1} parent=91 // pred_fallthru
          _
      $region92: #{tpu_custom_call.1} parent=5 // pred_fallthru
        _
    $region6: #{tpu_custom_call.1} parent=1 // loop_footer
      %s30 = sadd.s32 1, %s26
    $region7: #{tpu_custom_call.1} parent=1 // loop_footer_branch
      %25 = sbr.rel target = $region3
    $region8: #{tpu_custom_call.1} parent=1 // loop_exit
      _
    %2498 = vsyncpa [#allocation3], 1
    %s2499 = scalar_lea.sflag [#allocation3], 1
    %2500 = vsyncpa %s2499, 1
    %2501 = vsyncpa [#allocation6], 1
    %2502 = vsyncpa [#allocation4], 1
    %s2503 = scalar_lea.sflag [#allocation4], 1
    %2504 = vsyncpa %s2503, 1

</llo_original>
